<compile_context>
chip_gen: v6e
topology: v6e:2x2x1
jax: 0.10.0
libtpu: 0.0.40
codegen_flags: <defaults>
</compile_context>

<pallas_src>
import jax
import jax.numpy as jnp
from jax import lax
from jax.experimental import pallas as pl
from jax.experimental.pallas import tpu as pltpu

# ----------------------------- configuration --------------------------------
NUM_NODES     = 16
IN_STEPS      = 12
BATCH         = 2
INPUT_DIM     = 1
INPUT_EMB     = 8
PERIODS       = (24, 7)
PERIODS_EMB   = (8, 8)
WEEKEND_EMB   = 4
HOLIDAY_EMB   = 4
SPATIAL_EMB   = 8
ADAPTIVE_EMB  = 8
MODEL_DIM     = (INPUT_EMB + sum(PERIODS_EMB) + WEEKEND_EMB + HOLIDAY_EMB
                 + SPATIAL_EMB + ADAPTIVE_EMB)                      # = 48
NUM_CH        = INPUT_DIM + len(PERIODS) + 2                        # = 5

# fused (block-diagonal) projection: [value | oh(24) | oh(7) | oh(2) | oh(2)]
FUSED_IN  = INPUT_DIM + sum(PERIODS) + 2 + 2                        # = 36
FUSED_OUT = INPUT_EMB + sum(PERIODS_EMB) + WEEKEND_EMB + HOLIDAY_EMB  # = 32

assert INPUT_DIM == 1, "fused one-hot construction below assumes input_dim == 1"


# ------------------------------ Pallas kernel -------------------------------
def encoder_kernel(x_ref, w_ref, b_ref, node_ref, adp_ref, o_ref):
    """Single invocation over the whole ROWS = B*T*N slab.

    x_ref    : (ROWS, NUM_CH)        raw channels [value | tod | dow | wkd | hol]
    w_ref    : (FUSED_IN, FUSED_OUT) block-diag [w_in | period0 | period1 | wk | hd]
    b_ref    : (1, FUSED_OUT)        input_proj bias in cols 0:8, zeros elsewhere
    node_ref : (ROWS, SPATIAL_EMB)   node embedding (pre-broadcast over b, t)
    adp_ref  : (ROWS, ADAPTIVE_EMB)  adaptive embedding (pre-broadcast over b)
    o_ref    : (ROWS, MODEL_DIM)
    """
    x = x_ref[...]
    rows = x.shape[0]

    # categorical indices as (ROWS, 1) int32 columns (keep everything 2-D)
    tod = (x[:, 1:2] * jnp.float32(PERIODS[0])).astype(jnp.int32)
    dow = (x[:, 2:3] * jnp.float32(PERIODS[1])).astype(jnp.int32)
    wkd = x[:, 3:4].astype(jnp.int32)
    hol = x[:, 4:5].astype(jnp.int32)

    # lane position of the '1' inside the fused one-hot matrix, per block
    c_tod = INPUT_DIM + tod
    c_dow = INPUT_DIM + PERIODS[0] + dow
    c_wkd = INPUT_DIM + PERIODS[0] + PERIODS[1] + wkd
    c_hol = INPUT_DIM + PERIODS[0] + PERIODS[1] + 2 + hol

    lane = lax.broadcasted_iota(jnp.int32, (rows, FUSED_IN), 1)
    onehot = ((lane == c_tod) | (lane == c_dow) |
              (lane == c_wkd) | (lane == c_hol)).astype(jnp.float32)
    # column 0 carries the raw value, the rest the one-hot indicators
    fused = jnp.where(lane < INPUT_DIM, x[:, 0:INPUT_DIM], onehot)

    # ONE MXU issue: input_proj + all four embedding lookups at once
    proj = jnp.dot(fused, w_ref[...],
                   preferred_element_type=jnp.float32) + b_ref[...]

    # three wide pieces -> one full-tile store
    o_ref[...] = jnp.concatenate([proj, node_ref[...], adp_ref[...]], axis=-1)


# ------------------------------ host wrapper ---------------------------------
def _build_fused_tables(params):
    """Pack input_proj + embedding tables into one block-diagonal weight."""
    w = jnp.zeros((FUSED_IN, FUSED_OUT), jnp.float32)
    r, c = 0, 0
    w = w.at[r:r + INPUT_DIM, c:c + INPUT_EMB].set(params["w_in"])
    r += INPUT_DIM
    c += INPUT_EMB
    for i, p in enumerate(PERIODS):
        w = w.at[r:r + p, c:c + PERIODS_EMB[i]].set(params["period_tables"][i])
        r += p
        c += PERIODS_EMB[i]
    w = w.at[r:r + 2, c:c + WEEKEND_EMB].set(params["weekend"])
    r += 2
    c += WEEKEND_EMB
    w = w.at[r:r + 2, c:c + HOLIDAY_EMB].set(params["holiday"])
    b = jnp.zeros((1, FUSED_OUT), jnp.float32).at[:, :INPUT_EMB].set(params["b_in"])
    return w, b


@jax.jit
def encoder_forward(x, params):
    B, T, N, C = x.shape
    rows = B * T * N

    w_fused, b_fused = _build_fused_tables(params)

    # broadcast-only features hoisted out of the kernel (built exactly once)
    node_b = jnp.broadcast_to(params["node_emb"][None, None],
                              (B, T, N, SPATIAL_EMB)).reshape(rows, SPATIAL_EMB)
    adp_b = jnp.broadcast_to(params["adaptive"][None],
                             (B, T, N, ADAPTIVE_EMB)).reshape(rows, ADAPTIVE_EMB)

    out2 = pl.pallas_call(
        encoder_kernel,
        out_shape=jax.ShapeDtypeStruct((rows, MODEL_DIM), jnp.float32),
        in_specs=[pl.BlockSpec(memory_space=pltpu.MemorySpace.VMEM)] * 5,
        out_specs=pl.BlockSpec(memory_space=pltpu.MemorySpace.VMEM),
    )(x.reshape(rows, C), w_fused, b_fused, node_b, adp_b)

    return out2.reshape(B, T, N, MODEL_DIM)


# ------------------------------ pure-JAX reference ---------------------------
def encoder_reference(x, params):
    B, T = x.shape[0], x.shape[1]
    feats = [x[..., :INPUT_DIM] @ params["w_in"] + params["b_in"][0]]
    col = INPUT_DIM
    for i, p in enumerate(PERIODS):
        idx = (x[..., col] * jnp.float32(p)).astype(jnp.int32)
        feats.append(params["period_tables"][i][idx])
        col += 1
    feats.append(params["weekend"][x[..., col].astype(jnp.int32)]); col += 1
    feats.append(params["holiday"][x[..., col].astype(jnp.int32)]); col += 1
    feats.append(jnp.broadcast_to(params["node_emb"][None, None],
                                  (B, T, NUM_NODES, SPATIAL_EMB)))
    feats.append(jnp.broadcast_to(params["adaptive"][None],
                                  (B, T, NUM_NODES, ADAPTIVE_EMB)))
    return jnp.concatenate(feats, axis=-1)


# ------------------------------ param init -----------------------------------
def make_params(key):
    ks = jax.random.split(key, 8)
    return {
        "w_in": jax.random.normal(ks[0], (INPUT_DIM, INPUT_EMB), jnp.float32) * 0.1,
        "b_in": jax.random.normal(ks[1], (1, INPUT_EMB), jnp.float32) * 0.1,
        "period_tables": [
            jax.random.normal(ks[2 + i], (PERIODS[i], PERIODS_EMB[i]),
                              jnp.float32) * 0.1
            for i in range(len(PERIODS))
        ],
        "weekend": jax.random.normal(ks[4], (2, WEEKEND_EMB), jnp.float32) * 0.1,
        "holiday": jax.random.normal(ks[5], (2, HOLIDAY_EMB), jnp.float32) * 0.1,
        "node_emb": jax.random.normal(ks[6], (NUM_NODES, SPATIAL_EMB),
                                      jnp.float32) * 0.1,
        "adaptive": jax.random.normal(ks[7], (IN_STEPS, NUM_NODES, ADAPTIVE_EMB),
                                      jnp.float32) * 0.1,
    }


# ------------------------------ main ------------------------------------------
if __name__ == "__main__":
    key = jax.random.PRNGKey(0)
    k_par, k1, k2, k3, k4, k5 = jax.random.split(key, 6)
    params = make_params(k_par)

    shp = (BATCH, IN_STEPS, NUM_NODES, 1)
    val = jax.random.normal(k1, shp, jnp.float32)
    tod = (jax.random.randint(k2, shp, 0, PERIODS[0]).astype(jnp.float32)
           / PERIODS[0])
    dow = (jax.random.randint(k3, shp, 0, PERIODS[1]).astype(jnp.float32)
           / PERIODS[1])
    wkd = jax.random.randint(k4, shp, 0, 2).astype(jnp.float32)
    hol = jax.random.randint(k5, shp, 0, 2).astype(jnp.float32)
    x = jnp.concatenate([val, tod, dow, wkd, hol], axis=-1)   # (B, T, N, 5)

    out = encoder_forward(x, params)
    out = jax.block_until_ready(out)

    ref = encoder_reference(x, params)
    assert out.shape == (BATCH, IN_STEPS, NUM_NODES, MODEL_DIM)
    assert jnp.allclose(out, ref, atol=1e-5, rtol=1e-5)
    print("KERNEL_OK")
</pallas_src>

<mosaic_0001>
module attributes {stable_mosaic.version = 11 : i64} {
  func.func @encoder_kernel(%arg0: memref<384x5xf32, #tpu.memory_space<vmem>>, %arg1: memref<36x32xf32, #tpu.memory_space<vmem>>, %arg2: memref<1x32xf32, #tpu.memory_space<vmem>>, %arg3: memref<384x8xf32, #tpu.memory_space<vmem>>, %arg4: memref<384x8xf32, #tpu.memory_space<vmem>>, %arg5: memref<384x48xf32, #tpu.memory_space<vmem>>) attributes {dimension_semantics = [], scalar_prefetch = 0 : i64, scratch_operands = 0 : i64, tpu.core_type = #tpu.core_type<tc>} {
    %c0 = arith.constant 0 : index
    %c0_0 = arith.constant 0 : index
    %0 = vector.load %arg0[%c0, %c0_0] : memref<384x5xf32, #tpu.memory_space<vmem>>, vector<384x5xf32>
    %1 = vector.extract_strided_slice %0 {offsets = [0, 1], sizes = [384, 1], strides = [1, 1]} : vector<384x5xf32> to vector<384x1xf32>
    %cst = arith.constant 2.400000e+01 : f32
    %2 = vector.broadcast %cst : f32 to vector<384x1xf32>
    %3 = arith.mulf %1, %2 : vector<384x1xf32>
    %4 = arith.fptosi %3 : vector<384x1xf32> to vector<384x1xi32>
    %5 = vector.extract_strided_slice %0 {offsets = [0, 2], sizes = [384, 1], strides = [1, 1]} : vector<384x5xf32> to vector<384x1xf32>
    %cst_1 = arith.constant 7.000000e+00 : f32
    %6 = vector.broadcast %cst_1 : f32 to vector<384x1xf32>
    %7 = arith.mulf %5, %6 : vector<384x1xf32>
    %8 = arith.fptosi %7 : vector<384x1xf32> to vector<384x1xi32>
    %9 = vector.extract_strided_slice %0 {offsets = [0, 3], sizes = [384, 1], strides = [1, 1]} : vector<384x5xf32> to vector<384x1xf32>
    %10 = arith.fptosi %9 : vector<384x1xf32> to vector<384x1xi32>
    %11 = vector.extract_strided_slice %0 {offsets = [0, 4], sizes = [384, 1], strides = [1, 1]} : vector<384x5xf32> to vector<384x1xf32>
    %12 = arith.fptosi %11 : vector<384x1xf32> to vector<384x1xi32>
    %c1_i32 = arith.constant 1 : i32
    %13 = vector.broadcast %c1_i32 : i32 to vector<384x1xi32>
    %14 = arith.addi %13, %4 : vector<384x1xi32>
    %c25_i32 = arith.constant 25 : i32
    %15 = vector.broadcast %c25_i32 : i32 to vector<384x1xi32>
    %16 = arith.addi %15, %8 : vector<384x1xi32>
    %c32_i32 = arith.constant 32 : i32
    %17 = vector.broadcast %c32_i32 : i32 to vector<384x1xi32>
    %18 = arith.addi %17, %10 : vector<384x1xi32>
    %c34_i32 = arith.constant 34 : i32
    %19 = vector.broadcast %c34_i32 : i32 to vector<384x1xi32>
    %20 = arith.addi %19, %12 : vector<384x1xi32>
    %21 = tpu.iota {dimensions = array<i32: 1>} : vector<384x36xi32>
    %22 = vector.broadcast %14 : vector<384x1xi32> to vector<384x36xi32>
    %23 = arith.cmpi eq, %21, %22 : vector<384x36xi32>
    %24 = vector.broadcast %16 : vector<384x1xi32> to vector<384x36xi32>
    %25 = arith.cmpi eq, %21, %24 : vector<384x36xi32>
    %26 = arith.ori %23, %25 : vector<384x36xi1>
    %27 = vector.broadcast %18 : vector<384x1xi32> to vector<384x36xi32>
    %28 = arith.cmpi eq, %21, %27 : vector<384x36xi32>
    %29 = arith.ori %26, %28 : vector<384x36xi1>
    %30 = vector.broadcast %20 : vector<384x1xi32> to vector<384x36xi32>
    %31 = arith.cmpi eq, %21, %30 : vector<384x36xi32>
    %32 = arith.ori %29, %31 : vector<384x36xi1>
    %33 = arith.extui %32 : vector<384x36xi1> to vector<384x36xi32>
    %34 = arith.sitofp %33 : vector<384x36xi32> to vector<384x36xf32>
    %c1_i32_2 = arith.constant 1 : i32
    %35 = vector.broadcast %c1_i32_2 : i32 to vector<384x36xi32>
    %36 = arith.cmpi slt, %21, %35 : vector<384x36xi32>
    %37 = vector.extract_strided_slice %0 {offsets = [0, 0], sizes = [384, 1], strides = [1, 1]} : vector<384x5xf32> to vector<384x1xf32>
    %38 = vector.shape_cast %37 : vector<384x1xf32> to vector<384x1xf32>
    %39 = vector.broadcast %38 : vector<384x1xf32> to vector<384x36xf32>
    %40 = arith.select %36, %39, %34 : vector<384x36xi1>, vector<384x36xf32>
    %c0_3 = arith.constant 0 : index
    %c0_4 = arith.constant 0 : index
    %41 = vector.load %arg1[%c0_3, %c0_4] : memref<36x32xf32, #tpu.memory_space<vmem>>, vector<36x32xf32>
    %cst_5 = arith.constant dense<0.000000e+00> : vector<384x32xf32>
    %42 = tpu.matmul %40, %41, %cst_5 {dimension_numbers = #tpu.dot_dimension_numbers<[1], [0], [0], [1], [0, 0, 1, 1], [], []>} : vector<384x36xf32>, vector<36x32xf32>, vector<384x32xf32> -> vector<384x32xf32>
    %c0_6 = arith.constant 0 : index
    %c0_7 = arith.constant 0 : index
    %43 = vector.load %arg2[%c0_6, %c0_7] : memref<1x32xf32, #tpu.memory_space<vmem>>, vector<1x32xf32>
    %44 = vector.broadcast %43 : vector<1x32xf32> to vector<384x32xf32>
    %45 = arith.addf %42, %44 : vector<384x32xf32>
    %c0_8 = arith.constant 0 : index
    %c0_9 = arith.constant 0 : index
    %46 = vector.load %arg3[%c0_8, %c0_9] : memref<384x8xf32, #tpu.memory_space<vmem>>, vector<384x8xf32>
    %c0_10 = arith.constant 0 : index
    %c0_11 = arith.constant 0 : index
    %47 = vector.load %arg4[%c0_10, %c0_11] : memref<384x8xf32, #tpu.memory_space<vmem>>, vector<384x8xf32>
    %48 = tpu.concatenate %45, %46, %47 in 1 : vector<384x32xf32>, vector<384x8xf32>, vector<384x8xf32> -> vector<384x48xf32>
    %c0_12 = arith.constant 0 : index
    %c0_13 = arith.constant 0 : index
    %49 = vector.load %arg5[%c0_12, %c0_13] : memref<384x48xf32, #tpu.memory_space<vmem>>, vector<384x48xf32>
    tpu.vector_store %arg5[%c0_12, %c0_13], %48 {strides = array<i32>} : memref<384x48xf32, #tpu.memory_space<vmem>>, vector<384x48xf32>,
    return
  }
}

</mosaic_0001>

<llo_original>
// kernel: encoder_forward.1
$region0: #{encoder_forward.1}
  #allocation0 [shape = 'u32[]', space=smem, size = 0x4, offset = 0x4, fixed_abs, tag = 'smem constant byte address 0x4 - core index']
  #allocation1 [shape = 'u32[144,128]{1,0:T(1,128)}', space=vmem, size = 0x12000, scoped, tag = 'internal scratch']
  %s0 = inlined_call_operand.vmem [shape: f32[384,5], index: 0, kind: input, shape index: {}]
  %s1 = inlined_call_operand.vmem [shape: f32[36,32], index: 1, kind: input, shape index: {}]
  %s2 = inlined_call_operand.vmem [shape: f32[1,32], index: 2, kind: input, shape index: {}]
  %s3 = inlined_call_operand.vmem [shape: f32[384,8], index: 3, kind: input, shape index: {}]
  %s4 = inlined_call_operand.vmem [shape: f32[384,8], index: 4, kind: input, shape index: {}]
  %s5 = inlined_call_operand.hbm [shape: f32[384,48], index: 5, kind: output, shape index: {}]
  %s6 = sld [smem:[#allocation0]]
  $region30: #{encoder_forward.1} parent=0
    _
  %s8 = ssub.s32 1, %s6
  %s9 = scalar_select 0, %s8, %s6
  $region1: #{encoder_forward.1} parent=0
    #allocation2 [shape = 'u8[196608]{0}', space=vmem, size = 0x30000, scoped, tag = 'output window, operand 0, single buffered']
    #allocation3 [shape = 's32[1]{0}', space=sflag, size = 0x4, scoped, tag = 'scoped memory for encoder_forward.1']
    %10 = vsyncpa [#allocation3], 0
    // Predicated region
    $region2: #{encoder_forward.1} parent=1 // pred_check
      _
    $region3: #{encoder_forward.1} parent=1 // pred_check_branch
      %12 = sbr.rel (0) target = $region5
    $region4: #{encoder_forward.1} parent=1 // pred_region
      _
    $region5: #{encoder_forward.1} parent=1 // pred_fallthru
      _
    // Predicated region
    $region6: #{encoder_forward.1} parent=1 // pred_check
      _
    $region7: #{encoder_forward.1} parent=1 // pred_check_branch
      %14 = sbr.rel (0) target = $region9
    $region8: #{encoder_forward.1} parent=1 // pred_region
      _
    $region9: #{encoder_forward.1} parent=1 // pred_fallthru
      _
    // Predicated region
    $region10: #{encoder_forward.1} parent=1 // pred_check
      _
    $region11: #{encoder_forward.1} parent=1 // pred_check_branch
      %16 = sbr.rel (0) target = $region13
    $region12: #{encoder_forward.1} parent=1 // pred_region
      _
    $region13: #{encoder_forward.1} parent=1 // pred_fallthru
      _
    // Predicated region
    $region14: #{encoder_forward.1} parent=1 // pred_check
      _
    $region15: #{encoder_forward.1} parent=1 // pred_check_branch
      %18 = sbr.rel (0) target = $region17
    $region16: #{encoder_forward.1} parent=1 // pred_region
      _
    $region17: #{encoder_forward.1} parent=1 // pred_fallthru
      _
    // Predicated region
    $region18: #{encoder_forward.1} parent=1 // pred_check
      _
    $region19: #{encoder_forward.1} parent=1 // pred_check_branch
      %20 = sbr.rel (0) target = $region21
    $region20: #{encoder_forward.1} parent=1 // pred_region
      _
    $region21: #{encoder_forward.1} parent=1 // pred_fallthru
      _
    %v21 = vld [vmem:[%s0] sm:$0xff]
    %v22 = vld [vmem:[%s0 + $0x8] sm:$0xff]
    %v23 = vld [vmem:[%s0 + $0x10] sm:$0xff]
    %v24 = vld [vmem:[%s0 + $0x18] sm:$0xff]
    %v25 = vld [vmem:[%s0 + $0x20] sm:$0xff]
    %v26 = vld [vmem:[%s0 + $0x28] sm:$0xff]
    %v27 = vld [vmem:[%s0 + $0x30] sm:$0xff]
    %v28 = vld [vmem:[%s0 + $0x38] sm:$0xff]
    %v29 = vld [vmem:[%s0 + $0x40] sm:$0xff]
    %v30 = vld [vmem:[%s0 + $0x48] sm:$0xff]
    %v31 = vld [vmem:[%s0 + $0x50] sm:$0xff]
    %v32 = vld [vmem:[%s0 + $0x58] sm:$0xff]
    %v33 = vld [vmem:[%s0 + $0x60] sm:$0xff]
    %v34 = vld [vmem:[%s0 + $0x68] sm:$0xff]
    %v35 = vld [vmem:[%s0 + $0x70] sm:$0xff]
    %v36 = vld [vmem:[%s0 + $0x78] sm:$0xff]
    %v37 = vld [vmem:[%s0 + $0x80] sm:$0xff]
    %v38 = vld [vmem:[%s0 + $0x88] sm:$0xff]
    %v39 = vld [vmem:[%s0 + $0x90] sm:$0xff]
    %v40 = vld [vmem:[%s0 + $0x98] sm:$0xff]
    %v41 = vld [vmem:[%s0 + $0xa0] sm:$0xff]
    %v42 = vld [vmem:[%s0 + $0xa8] sm:$0xff]
    %v43 = vld [vmem:[%s0 + $0xb0] sm:$0xff]
    %v44 = vld [vmem:[%s0 + $0xb8] sm:$0xff]
    %v45 = vld [vmem:[%s0 + $0xc0] sm:$0xff]
    %v46 = vld [vmem:[%s0 + $0xc8] sm:$0xff]
    %v47 = vld [vmem:[%s0 + $0xd0] sm:$0xff]
    %v48 = vld [vmem:[%s0 + $0xd8] sm:$0xff]
    %v49 = vld [vmem:[%s0 + $0xe0] sm:$0xff]
    %v50 = vld [vmem:[%s0 + $0xe8] sm:$0xff]
    %v51 = vld [vmem:[%s0 + $0xf0] sm:$0xff]
    %v52 = vld [vmem:[%s0 + $0xf8] sm:$0xff]
    %v53 = vld [vmem:[%s0 + $0x100] sm:$0xff]
    %v54 = vld [vmem:[%s0 + $0x108] sm:$0xff]
    %v55 = vld [vmem:[%s0 + $0x110] sm:$0xff]
    %v56 = vld [vmem:[%s0 + $0x118] sm:$0xff]
    %v57 = vld [vmem:[%s0 + $0x120] sm:$0xff]
    %v58 = vld [vmem:[%s0 + $0x128] sm:$0xff]
    %v59 = vld [vmem:[%s0 + $0x130] sm:$0xff]
    %v60 = vld [vmem:[%s0 + $0x138] sm:$0xff]
    %v61 = vld [vmem:[%s0 + $0x140] sm:$0xff]
    %v62 = vld [vmem:[%s0 + $0x148] sm:$0xff]
    %v63 = vld [vmem:[%s0 + $0x150] sm:$0xff]
    %v64 = vld [vmem:[%s0 + $0x158] sm:$0xff]
    %v65 = vld [vmem:[%s0 + $0x160] sm:$0xff]
    %v66 = vld [vmem:[%s0 + $0x168] sm:$0xff]
    %v67 = vld [vmem:[%s0 + $0x170] sm:$0xff]
    %v68 = vld [vmem:[%s0 + $0x178] sm:$0xff]
    %v69 = vmul.f32 %v21, 24.0
    %v70 = vmul.f32 %v22, 24.0
    %v71 = vmul.f32 %v23, 24.0
    %v72 = vmul.f32 %v24, 24.0
    %v73 = vmul.f32 %v25, 24.0
    %v74 = vmul.f32 %v26, 24.0
    %v75 = vmul.f32 %v27, 24.0
    %v76 = vmul.f32 %v28, 24.0
    %v77 = vmul.f32 %v29, 24.0
    %v78 = vmul.f32 %v30, 24.0
    %v79 = vmul.f32 %v31, 24.0
    %v80 = vmul.f32 %v32, 24.0
    %v81 = vmul.f32 %v33, 24.0
    %v82 = vmul.f32 %v34, 24.0
    %v83 = vmul.f32 %v35, 24.0
    %v84 = vmul.f32 %v36, 24.0
    %v85 = vmul.f32 %v37, 24.0
    %v86 = vmul.f32 %v38, 24.0
    %v87 = vmul.f32 %v39, 24.0
    %v88 = vmul.f32 %v40, 24.0
    %v89 = vmul.f32 %v41, 24.0
    %v90 = vmul.f32 %v42, 24.0
    %v91 = vmul.f32 %v43, 24.0
    %v92 = vmul.f32 %v44, 24.0
    %v93 = vmul.f32 %v45, 24.0
    %v94 = vmul.f32 %v46, 24.0
    %v95 = vmul.f32 %v47, 24.0
    %v96 = vmul.f32 %v48, 24.0
    %v97 = vmul.f32 %v49, 24.0
    %v98 = vmul.f32 %v50, 24.0
    %v99 = vmul.f32 %v51, 24.0
    %v100 = vmul.f32 %v52, 24.0
    %v101 = vmul.f32 %v53, 24.0
    %v102 = vmul.f32 %v54, 24.0
    %v103 = vmul.f32 %v55, 24.0
    %v104 = vmul.f32 %v56, 24.0
    %v105 = vmul.f32 %v57, 24.0
    %v106 = vmul.f32 %v58, 24.0
    %v107 = vmul.f32 %v59, 24.0
    %v108 = vmul.f32 %v60, 24.0
    %v109 = vmul.f32 %v61, 24.0
    %v110 = vmul.f32 %v62, 24.0
    %v111 = vmul.f32 %v63, 24.0
    %v112 = vmul.f32 %v64, 24.0
    %v113 = vmul.f32 %v65, 24.0
    %v114 = vmul.f32 %v66, 24.0
    %v115 = vmul.f32 %v67, 24.0
    %v116 = vmul.f32 %v68, 24.0
    %v117 = vcvt.f32.s32.to.zero.pseudo %v69
    %v118 = vcvt.f32.s32.to.zero.pseudo %v70
    %v119 = vcvt.f32.s32.to.zero.pseudo %v71
    %v120 = vcvt.f32.s32.to.zero.pseudo %v72
    %v121 = vcvt.f32.s32.to.zero.pseudo %v73
    %v122 = vcvt.f32.s32.to.zero.pseudo %v74
    %v123 = vcvt.f32.s32.to.zero.pseudo %v75
    %v124 = vcvt.f32.s32.to.zero.pseudo %v76
    %v125 = vcvt.f32.s32.to.zero.pseudo %v77
    %v126 = vcvt.f32.s32.to.zero.pseudo %v78
    %v127 = vcvt.f32.s32.to.zero.pseudo %v79
    %v128 = vcvt.f32.s32.to.zero.pseudo %v80
    %v129 = vcvt.f32.s32.to.zero.pseudo %v81
    %v130 = vcvt.f32.s32.to.zero.pseudo %v82
    %v131 = vcvt.f32.s32.to.zero.pseudo %v83
    %v132 = vcvt.f32.s32.to.zero.pseudo %v84
    %v133 = vcvt.f32.s32.to.zero.pseudo %v85
    %v134 = vcvt.f32.s32.to.zero.pseudo %v86
    %v135 = vcvt.f32.s32.to.zero.pseudo %v87
    %v136 = vcvt.f32.s32.to.zero.pseudo %v88
    %v137 = vcvt.f32.s32.to.zero.pseudo %v89
    %v138 = vcvt.f32.s32.to.zero.pseudo %v90
    %v139 = vcvt.f32.s32.to.zero.pseudo %v91
    %v140 = vcvt.f32.s32.to.zero.pseudo %v92
    %v141 = vcvt.f32.s32.to.zero.pseudo %v93
    %v142 = vcvt.f32.s32.to.zero.pseudo %v94
    %v143 = vcvt.f32.s32.to.zero.pseudo %v95
    %v144 = vcvt.f32.s32.to.zero.pseudo %v96
    %v145 = vcvt.f32.s32.to.zero.pseudo %v97
    %v146 = vcvt.f32.s32.to.zero.pseudo %v98
    %v147 = vcvt.f32.s32.to.zero.pseudo %v99
    %v148 = vcvt.f32.s32.to.zero.pseudo %v100
    %v149 = vcvt.f32.s32.to.zero.pseudo %v101
    %v150 = vcvt.f32.s32.to.zero.pseudo %v102
    %v151 = vcvt.f32.s32.to.zero.pseudo %v103
    %v152 = vcvt.f32.s32.to.zero.pseudo %v104
    %v153 = vcvt.f32.s32.to.zero.pseudo %v105
    %v154 = vcvt.f32.s32.to.zero.pseudo %v106
    %v155 = vcvt.f32.s32.to.zero.pseudo %v107
    %v156 = vcvt.f32.s32.to.zero.pseudo %v108
    %v157 = vcvt.f32.s32.to.zero.pseudo %v109
    %v158 = vcvt.f32.s32.to.zero.pseudo %v110
    %v159 = vcvt.f32.s32.to.zero.pseudo %v111
    %v160 = vcvt.f32.s32.to.zero.pseudo %v112
    %v161 = vcvt.f32.s32.to.zero.pseudo %v113
    %v162 = vcvt.f32.s32.to.zero.pseudo %v114
    %v163 = vcvt.f32.s32.to.zero.pseudo %v115
    %v164 = vcvt.f32.s32.to.zero.pseudo %v116
    %v165 = vmul.f32 %v21, 7.0
    %v166 = vmul.f32 %v22, 7.0
    %v167 = vmul.f32 %v23, 7.0
    %v168 = vmul.f32 %v24, 7.0
    %v169 = vmul.f32 %v25, 7.0
    %v170 = vmul.f32 %v26, 7.0
    %v171 = vmul.f32 %v27, 7.0
    %v172 = vmul.f32 %v28, 7.0
    %v173 = vmul.f32 %v29, 7.0
    %v174 = vmul.f32 %v30, 7.0
    %v175 = vmul.f32 %v31, 7.0
    %v176 = vmul.f32 %v32, 7.0
    %v177 = vmul.f32 %v33, 7.0
    %v178 = vmul.f32 %v34, 7.0
    %v179 = vmul.f32 %v35, 7.0
    %v180 = vmul.f32 %v36, 7.0
    %v181 = vmul.f32 %v37, 7.0
    %v182 = vmul.f32 %v38, 7.0
    %v183 = vmul.f32 %v39, 7.0
    %v184 = vmul.f32 %v40, 7.0
    %v185 = vmul.f32 %v41, 7.0
    %v186 = vmul.f32 %v42, 7.0
    %v187 = vmul.f32 %v43, 7.0
    %v188 = vmul.f32 %v44, 7.0
    %v189 = vmul.f32 %v45, 7.0
    %v190 = vmul.f32 %v46, 7.0
    %v191 = vmul.f32 %v47, 7.0
    %v192 = vmul.f32 %v48, 7.0
    %v193 = vmul.f32 %v49, 7.0
    %v194 = vmul.f32 %v50, 7.0
    %v195 = vmul.f32 %v51, 7.0
    %v196 = vmul.f32 %v52, 7.0
    %v197 = vmul.f32 %v53, 7.0
    %v198 = vmul.f32 %v54, 7.0
    %v199 = vmul.f32 %v55, 7.0
    %v200 = vmul.f32 %v56, 7.0
    %v201 = vmul.f32 %v57, 7.0
    %v202 = vmul.f32 %v58, 7.0
    %v203 = vmul.f32 %v59, 7.0
    %v204 = vmul.f32 %v60, 7.0
    %v205 = vmul.f32 %v61, 7.0
    %v206 = vmul.f32 %v62, 7.0
    %v207 = vmul.f32 %v63, 7.0
    %v208 = vmul.f32 %v64, 7.0
    %v209 = vmul.f32 %v65, 7.0
    %v210 = vmul.f32 %v66, 7.0
    %v211 = vmul.f32 %v67, 7.0
    %v212 = vmul.f32 %v68, 7.0
    %v213 = vcvt.f32.s32.to.zero.pseudo %v165
    %v214 = vcvt.f32.s32.to.zero.pseudo %v166
    %v215 = vcvt.f32.s32.to.zero.pseudo %v167
    %v216 = vcvt.f32.s32.to.zero.pseudo %v168
    %v217 = vcvt.f32.s32.to.zero.pseudo %v169
    %v218 = vcvt.f32.s32.to.zero.pseudo %v170
    %v219 = vcvt.f32.s32.to.zero.pseudo %v171
    %v220 = vcvt.f32.s32.to.zero.pseudo %v172
    %v221 = vcvt.f32.s32.to.zero.pseudo %v173
    %v222 = vcvt.f32.s32.to.zero.pseudo %v174
    %v223 = vcvt.f32.s32.to.zero.pseudo %v175
    %v224 = vcvt.f32.s32.to.zero.pseudo %v176
    %v225 = vcvt.f32.s32.to.zero.pseudo %v177
    %v226 = vcvt.f32.s32.to.zero.pseudo %v178
    %v227 = vcvt.f32.s32.to.zero.pseudo %v179
    %v228 = vcvt.f32.s32.to.zero.pseudo %v180
    %v229 = vcvt.f32.s32.to.zero.pseudo %v181
    %v230 = vcvt.f32.s32.to.zero.pseudo %v182
    %v231 = vcvt.f32.s32.to.zero.pseudo %v183
    %v232 = vcvt.f32.s32.to.zero.pseudo %v184
    %v233 = vcvt.f32.s32.to.zero.pseudo %v185
    %v234 = vcvt.f32.s32.to.zero.pseudo %v186
    %v235 = vcvt.f32.s32.to.zero.pseudo %v187
    %v236 = vcvt.f32.s32.to.zero.pseudo %v188
    %v237 = vcvt.f32.s32.to.zero.pseudo %v189
    %v238 = vcvt.f32.s32.to.zero.pseudo %v190
    %v239 = vcvt.f32.s32.to.zero.pseudo %v191
    %v240 = vcvt.f32.s32.to.zero.pseudo %v192
    %v241 = vcvt.f32.s32.to.zero.pseudo %v193
    %v242 = vcvt.f32.s32.to.zero.pseudo %v194
    %v243 = vcvt.f32.s32.to.zero.pseudo %v195
    %v244 = vcvt.f32.s32.to.zero.pseudo %v196
    %v245 = vcvt.f32.s32.to.zero.pseudo %v197
    %v246 = vcvt.f32.s32.to.zero.pseudo %v198
    %v247 = vcvt.f32.s32.to.zero.pseudo %v199
    %v248 = vcvt.f32.s32.to.zero.pseudo %v200
    %v249 = vcvt.f32.s32.to.zero.pseudo %v201
    %v250 = vcvt.f32.s32.to.zero.pseudo %v202
    %v251 = vcvt.f32.s32.to.zero.pseudo %v203
    %v252 = vcvt.f32.s32.to.zero.pseudo %v204
    %v253 = vcvt.f32.s32.to.zero.pseudo %v205
    %v254 = vcvt.f32.s32.to.zero.pseudo %v206
    %v255 = vcvt.f32.s32.to.zero.pseudo %v207
    %v256 = vcvt.f32.s32.to.zero.pseudo %v208
    %v257 = vcvt.f32.s32.to.zero.pseudo %v209
    %v258 = vcvt.f32.s32.to.zero.pseudo %v210
    %v259 = vcvt.f32.s32.to.zero.pseudo %v211
    %v260 = vcvt.f32.s32.to.zero.pseudo %v212
    %v261 = vcvt.f32.s32.to.zero.pseudo %v21
    %v262 = vcvt.f32.s32.to.zero.pseudo %v22
    %v263 = vcvt.f32.s32.to.zero.pseudo %v23
    %v264 = vcvt.f32.s32.to.zero.pseudo %v24
    %v265 = vcvt.f32.s32.to.zero.pseudo %v25
    %v266 = vcvt.f32.s32.to.zero.pseudo %v26
    %v267 = vcvt.f32.s32.to.zero.pseudo %v27
    %v268 = vcvt.f32.s32.to.zero.pseudo %v28
    %v269 = vcvt.f32.s32.to.zero.pseudo %v29
    %v270 = vcvt.f32.s32.to.zero.pseudo %v30
    %v271 = vcvt.f32.s32.to.zero.pseudo %v31
    %v272 = vcvt.f32.s32.to.zero.pseudo %v32
    %v273 = vcvt.f32.s32.to.zero.pseudo %v33
    %v274 = vcvt.f32.s32.to.zero.pseudo %v34
    %v275 = vcvt.f32.s32.to.zero.pseudo %v35
    %v276 = vcvt.f32.s32.to.zero.pseudo %v36
    %v277 = vcvt.f32.s32.to.zero.pseudo %v37
    %v278 = vcvt.f32.s32.to.zero.pseudo %v38
    %v279 = vcvt.f32.s32.to.zero.pseudo %v39
    %v280 = vcvt.f32.s32.to.zero.pseudo %v40
    %v281 = vcvt.f32.s32.to.zero.pseudo %v41
    %v282 = vcvt.f32.s32.to.zero.pseudo %v42
    %v283 = vcvt.f32.s32.to.zero.pseudo %v43
    %v284 = vcvt.f32.s32.to.zero.pseudo %v44
    %v285 = vcvt.f32.s32.to.zero.pseudo %v45
    %v286 = vcvt.f32.s32.to.zero.pseudo %v46
    %v287 = vcvt.f32.s32.to.zero.pseudo %v47
    %v288 = vcvt.f32.s32.to.zero.pseudo %v48
    %v289 = vcvt.f32.s32.to.zero.pseudo %v49
    %v290 = vcvt.f32.s32.to.zero.pseudo %v50
    %v291 = vcvt.f32.s32.to.zero.pseudo %v51
    %v292 = vcvt.f32.s32.to.zero.pseudo %v52
    %v293 = vcvt.f32.s32.to.zero.pseudo %v53
    %v294 = vcvt.f32.s32.to.zero.pseudo %v54
    %v295 = vcvt.f32.s32.to.zero.pseudo %v55
    %v296 = vcvt.f32.s32.to.zero.pseudo %v56
    %v297 = vcvt.f32.s32.to.zero.pseudo %v57
    %v298 = vcvt.f32.s32.to.zero.pseudo %v58
    %v299 = vcvt.f32.s32.to.zero.pseudo %v59
    %v300 = vcvt.f32.s32.to.zero.pseudo %v60
    %v301 = vcvt.f32.s32.to.zero.pseudo %v61
    %v302 = vcvt.f32.s32.to.zero.pseudo %v62
    %v303 = vcvt.f32.s32.to.zero.pseudo %v63
    %v304 = vcvt.f32.s32.to.zero.pseudo %v64
    %v305 = vcvt.f32.s32.to.zero.pseudo %v65
    %v306 = vcvt.f32.s32.to.zero.pseudo %v66
    %v307 = vcvt.f32.s32.to.zero.pseudo %v67
    %v308 = vcvt.f32.s32.to.zero.pseudo %v68
    %v309 = vadd.s32 %v117, 1
    %v310 = vadd.s32 %v118, 1
    %v311 = vadd.s32 %v119, 1
    %v312 = vadd.s32 %v120, 1
    %v313 = vadd.s32 %v121, 1
    %v314 = vadd.s32 %v122, 1
    %v315 = vadd.s32 %v123, 1
    %v316 = vadd.s32 %v124, 1
    %v317 = vadd.s32 %v125, 1
    %v318 = vadd.s32 %v126, 1
    %v319 = vadd.s32 %v127, 1
    %v320 = vadd.s32 %v128, 1
    %v321 = vadd.s32 %v129, 1
    %v322 = vadd.s32 %v130, 1
    %v323 = vadd.s32 %v131, 1
    %v324 = vadd.s32 %v132, 1
    %v325 = vadd.s32 %v133, 1
    %v326 = vadd.s32 %v134, 1
    %v327 = vadd.s32 %v135, 1
    %v328 = vadd.s32 %v136, 1
    %v329 = vadd.s32 %v137, 1
    %v330 = vadd.s32 %v138, 1
    %v331 = vadd.s32 %v139, 1
    %v332 = vadd.s32 %v140, 1
    %v333 = vadd.s32 %v141, 1
    %v334 = vadd.s32 %v142, 1
    %v335 = vadd.s32 %v143, 1
    %v336 = vadd.s32 %v144, 1
    %v337 = vadd.s32 %v145, 1
    %v338 = vadd.s32 %v146, 1
    %v339 = vadd.s32 %v147, 1
    %v340 = vadd.s32 %v148, 1
    %v341 = vadd.s32 %v149, 1
    %v342 = vadd.s32 %v150, 1
    %v343 = vadd.s32 %v151, 1
    %v344 = vadd.s32 %v152, 1
    %v345 = vadd.s32 %v153, 1
    %v346 = vadd.s32 %v154, 1
    %v347 = vadd.s32 %v155, 1
    %v348 = vadd.s32 %v156, 1
    %v349 = vadd.s32 %v157, 1
    %v350 = vadd.s32 %v158, 1
    %v351 = vadd.s32 %v159, 1
    %v352 = vadd.s32 %v160, 1
    %v353 = vadd.s32 %v161, 1
    %v354 = vadd.s32 %v162, 1
    %v355 = vadd.s32 %v163, 1
    %v356 = vadd.s32 %v164, 1
    %v357 = vadd.s32 %v213, 25
    %v358 = vadd.s32 %v214, 25
    %v359 = vadd.s32 %v215, 25
    %v360 = vadd.s32 %v216, 25
    %v361 = vadd.s32 %v217, 25
    %v362 = vadd.s32 %v218, 25
    %v363 = vadd.s32 %v219, 25
    %v364 = vadd.s32 %v220, 25
    %v365 = vadd.s32 %v221, 25
    %v366 = vadd.s32 %v222, 25
    %v367 = vadd.s32 %v223, 25
    %v368 = vadd.s32 %v224, 25
    %v369 = vadd.s32 %v225, 25
    %v370 = vadd.s32 %v226, 25
    %v371 = vadd.s32 %v227, 25
    %v372 = vadd.s32 %v228, 25
    %v373 = vadd.s32 %v229, 25
    %v374 = vadd.s32 %v230, 25
    %v375 = vadd.s32 %v231, 25
    %v376 = vadd.s32 %v232, 25
    %v377 = vadd.s32 %v233, 25
    %v378 = vadd.s32 %v234, 25
    %v379 = vadd.s32 %v235, 25
    %v380 = vadd.s32 %v236, 25
    %v381 = vadd.s32 %v237, 25
    %v382 = vadd.s32 %v238, 25
    %v383 = vadd.s32 %v239, 25
    %v384 = vadd.s32 %v240, 25
    %v385 = vadd.s32 %v241, 25
    %v386 = vadd.s32 %v242, 25
    %v387 = vadd.s32 %v243, 25
    %v388 = vadd.s32 %v244, 25
    %v389 = vadd.s32 %v245, 25
    %v390 = vadd.s32 %v246, 25
    %v391 = vadd.s32 %v247, 25
    %v392 = vadd.s32 %v248, 25
    %v393 = vadd.s32 %v249, 25
    %v394 = vadd.s32 %v250, 25
    %v395 = vadd.s32 %v251, 25
    %v396 = vadd.s32 %v252, 25
    %v397 = vadd.s32 %v253, 25
    %v398 = vadd.s32 %v254, 25
    %v399 = vadd.s32 %v255, 25
    %v400 = vadd.s32 %v256, 25
    %v401 = vadd.s32 %v257, 25
    %v402 = vadd.s32 %v258, 25
    %v403 = vadd.s32 %v259, 25
    %v404 = vadd.s32 %v260, 25
    %v405 = vadd.s32 %v261, 32
    %v406 = vadd.s32 %v262, 32
    %v407 = vadd.s32 %v263, 32
    %v408 = vadd.s32 %v264, 32
    %v409 = vadd.s32 %v265, 32
    %v410 = vadd.s32 %v266, 32
    %v411 = vadd.s32 %v267, 32
    %v412 = vadd.s32 %v268, 32
    %v413 = vadd.s32 %v269, 32
    %v414 = vadd.s32 %v270, 32
    %v415 = vadd.s32 %v271, 32
    %v416 = vadd.s32 %v272, 32
    %v417 = vadd.s32 %v273, 32
    %v418 = vadd.s32 %v274, 32
    %v419 = vadd.s32 %v275, 32
    %v420 = vadd.s32 %v276, 32
    %v421 = vadd.s32 %v277, 32
    %v422 = vadd.s32 %v278, 32
    %v423 = vadd.s32 %v279, 32
    %v424 = vadd.s32 %v280, 32
    %v425 = vadd.s32 %v281, 32
    %v426 = vadd.s32 %v282, 32
    %v427 = vadd.s32 %v283, 32
    %v428 = vadd.s32 %v284, 32
    %v429 = vadd.s32 %v285, 32
    %v430 = vadd.s32 %v286, 32
    %v431 = vadd.s32 %v287, 32
    %v432 = vadd.s32 %v288, 32
    %v433 = vadd.s32 %v289, 32
    %v434 = vadd.s32 %v290, 32
    %v435 = vadd.s32 %v291, 32
    %v436 = vadd.s32 %v292, 32
    %v437 = vadd.s32 %v293, 32
    %v438 = vadd.s32 %v294, 32
    %v439 = vadd.s32 %v295, 32
    %v440 = vadd.s32 %v296, 32
    %v441 = vadd.s32 %v297, 32
    %v442 = vadd.s32 %v298, 32
    %v443 = vadd.s32 %v299, 32
    %v444 = vadd.s32 %v300, 32
    %v445 = vadd.s32 %v301, 32
    %v446 = vadd.s32 %v302, 32
    %v447 = vadd.s32 %v303, 32
    %v448 = vadd.s32 %v304, 32
    %v449 = vadd.s32 %v305, 32
    %v450 = vadd.s32 %v306, 32
    %v451 = vadd.s32 %v307, 32
    %v452 = vadd.s32 %v308, 32
    %v453 = vadd.s32 %v261, 34
    %v454 = vadd.s32 %v262, 34
    %v455 = vadd.s32 %v263, 34
    %v456 = vadd.s32 %v264, 34
    %v457 = vadd.s32 %v265, 34
    %v458 = vadd.s32 %v266, 34
    %v459 = vadd.s32 %v267, 34
    %v460 = vadd.s32 %v268, 34
    %v461 = vadd.s32 %v269, 34
    %v462 = vadd.s32 %v270, 34
    %v463 = vadd.s32 %v271, 34
    %v464 = vadd.s32 %v272, 34
    %v465 = vadd.s32 %v273, 34
    %v466 = vadd.s32 %v274, 34
    %v467 = vadd.s32 %v275, 34
    %v468 = vadd.s32 %v276, 34
    %v469 = vadd.s32 %v277, 34
    %v470 = vadd.s32 %v278, 34
    %v471 = vadd.s32 %v279, 34
    %v472 = vadd.s32 %v280, 34
    %v473 = vadd.s32 %v281, 34
    %v474 = vadd.s32 %v282, 34
    %v475 = vadd.s32 %v283, 34
    %v476 = vadd.s32 %v284, 34
    %v477 = vadd.s32 %v285, 34
    %v478 = vadd.s32 %v286, 34
    %v479 = vadd.s32 %v287, 34
    %v480 = vadd.s32 %v288, 34
    %v481 = vadd.s32 %v289, 34
    %v482 = vadd.s32 %v290, 34
    %v483 = vadd.s32 %v291, 34
    %v484 = vadd.s32 %v292, 34
    %v485 = vadd.s32 %v293, 34
    %v486 = vadd.s32 %v294, 34
    %v487 = vadd.s32 %v295, 34
    %v488 = vadd.s32 %v296, 34
    %v489 = vadd.s32 %v297, 34
    %v490 = vadd.s32 %v298, 34
    %v491 = vadd.s32 %v299, 34
    %v492 = vadd.s32 %v300, 34
    %v493 = vadd.s32 %v301, 34
    %v494 = vadd.s32 %v302, 34
    %v495 = vadd.s32 %v303, 34
    %v496 = vadd.s32 %v304, 34
    %v497 = vadd.s32 %v305, 34
    %v498 = vadd.s32 %v306, 34
    %v499 = vadd.s32 %v307, 34
    %v500 = vadd.s32 %v308, 34
    %v501 = vlaneseq
    %v502 = vand.u32 %v501, 127
    %503 = vset.pattern.permute.xlu0 1
    %504 = vperm.xlu0 %503, %v309
    %v505 = vpop.permute.xlu0 %504
    %506 = vset.pattern.permute.xlu0 1
    %507 = vperm.xlu0 %506, %v310
    %v508 = vpop.permute.xlu0 %507
    %509 = vset.pattern.permute.xlu0 1
    %510 = vperm.xlu0 %509, %v311
    %v511 = vpop.permute.xlu0 %510
    %512 = vset.pattern.permute.xlu0 1
    %513 = vperm.xlu0 %512, %v312
    %v514 = vpop.permute.xlu0 %513
    %515 = vset.pattern.permute.xlu0 1
    %516 = vperm.xlu0 %515, %v313
    %v517 = vpop.permute.xlu0 %516
    %518 = vset.pattern.permute.xlu0 1
    %519 = vperm.xlu0 %518, %v314
    %v520 = vpop.permute.xlu0 %519
    %521 = vset.pattern.permute.xlu0 1
    %522 = vperm.xlu0 %521, %v315
    %v523 = vpop.permute.xlu0 %522
    %524 = vset.pattern.permute.xlu0 1
    %525 = vperm.xlu0 %524, %v316
    %v526 = vpop.permute.xlu0 %525
    %527 = vset.pattern.permute.xlu0 1
    %528 = vperm.xlu0 %527, %v317
    %v529 = vpop.permute.xlu0 %528
    %530 = vset.pattern.permute.xlu0 1
    %531 = vperm.xlu0 %530, %v318
    %v532 = vpop.permute.xlu0 %531
    %533 = vset.pattern.permute.xlu0 1
    %534 = vperm.xlu0 %533, %v319
    %v535 = vpop.permute.xlu0 %534
    %536 = vset.pattern.permute.xlu0 1
    %537 = vperm.xlu0 %536, %v320
    %v538 = vpop.permute.xlu0 %537
    %539 = vset.pattern.permute.xlu0 1
    %540 = vperm.xlu0 %539, %v321
    %v541 = vpop.permute.xlu0 %540
    %542 = vset.pattern.permute.xlu0 1
    %543 = vperm.xlu0 %542, %v322
    %v544 = vpop.permute.xlu0 %543
    %545 = vset.pattern.permute.xlu0 1
    %546 = vperm.xlu0 %545, %v323
    %v547 = vpop.permute.xlu0 %546
    %548 = vset.pattern.permute.xlu0 1
    %549 = vperm.xlu0 %548, %v324
    %v550 = vpop.permute.xlu0 %549
    %551 = vset.pattern.permute.xlu0 1
    %552 = vperm.xlu0 %551, %v325
    %v553 = vpop.permute.xlu0 %552
    %554 = vset.pattern.permute.xlu0 1
    %555 = vperm.xlu0 %554, %v326
    %v556 = vpop.permute.xlu0 %555
    %557 = vset.pattern.permute.xlu0 1
    %558 = vperm.xlu0 %557, %v327
    %v559 = vpop.permute.xlu0 %558
    %560 = vset.pattern.permute.xlu0 1
    %561 = vperm.xlu0 %560, %v328
    %v562 = vpop.permute.xlu0 %561
    %563 = vset.pattern.permute.xlu0 1
    %564 = vperm.xlu0 %563, %v329
    %v565 = vpop.permute.xlu0 %564
    %566 = vset.pattern.permute.xlu0 1
    %567 = vperm.xlu0 %566, %v330
    %v568 = vpop.permute.xlu0 %567
    %569 = vset.pattern.permute.xlu0 1
    %570 = vperm.xlu0 %569, %v331
    %v571 = vpop.permute.xlu0 %570
    %572 = vset.pattern.permute.xlu0 1
    %573 = vperm.xlu0 %572, %v332
    %v574 = vpop.permute.xlu0 %573
    %575 = vset.pattern.permute.xlu0 1
    %576 = vperm.xlu0 %575, %v333
    %v577 = vpop.permute.xlu0 %576
    %578 = vset.pattern.permute.xlu0 1
    %579 = vperm.xlu0 %578, %v334
    %v580 = vpop.permute.xlu0 %579
    %581 = vset.pattern.permute.xlu0 1
    %582 = vperm.xlu0 %581, %v335
    %v583 = vpop.permute.xlu0 %582
    %584 = vset.pattern.permute.xlu0 1
    %585 = vperm.xlu0 %584, %v336
    %v586 = vpop.permute.xlu0 %585
    %587 = vset.pattern.permute.xlu0 1
    %588 = vperm.xlu0 %587, %v337
    %v589 = vpop.permute.xlu0 %588
    %590 = vset.pattern.permute.xlu0 1
    %591 = vperm.xlu0 %590, %v338
    %v592 = vpop.permute.xlu0 %591
    %593 = vset.pattern.permute.xlu0 1
    %594 = vperm.xlu0 %593, %v339
    %v595 = vpop.permute.xlu0 %594
    %596 = vset.pattern.permute.xlu0 1
    %597 = vperm.xlu0 %596, %v340
    %v598 = vpop.permute.xlu0 %597
    %599 = vset.pattern.permute.xlu0 1
    %600 = vperm.xlu0 %599, %v341
    %v601 = vpop.permute.xlu0 %600
    %602 = vset.pattern.permute.xlu0 1
    %603 = vperm.xlu0 %602, %v342
    %v604 = vpop.permute.xlu0 %603
    %605 = vset.pattern.permute.xlu0 1
    %606 = vperm.xlu0 %605, %v343
    %v607 = vpop.permute.xlu0 %606
    %608 = vset.pattern.permute.xlu0 1
    %609 = vperm.xlu0 %608, %v344
    %v610 = vpop.permute.xlu0 %609
    %611 = vset.pattern.permute.xlu0 1
    %612 = vperm.xlu0 %611, %v345
    %v613 = vpop.permute.xlu0 %612
    %614 = vset.pattern.permute.xlu0 1
    %615 = vperm.xlu0 %614, %v346
    %v616 = vpop.permute.xlu0 %615
    %617 = vset.pattern.permute.xlu0 1
    %618 = vperm.xlu0 %617, %v347
    %v619 = vpop.permute.xlu0 %618
    %620 = vset.pattern.permute.xlu0 1
    %621 = vperm.xlu0 %620, %v348
    %v622 = vpop.permute.xlu0 %621
    %623 = vset.pattern.permute.xlu0 1
    %624 = vperm.xlu0 %623, %v349
    %v625 = vpop.permute.xlu0 %624
    %626 = vset.pattern.permute.xlu0 1
    %627 = vperm.xlu0 %626, %v350
    %v628 = vpop.permute.xlu0 %627
    %629 = vset.pattern.permute.xlu0 1
    %630 = vperm.xlu0 %629, %v351
    %v631 = vpop.permute.xlu0 %630
    %632 = vset.pattern.permute.xlu0 1
    %633 = vperm.xlu0 %632, %v352
    %v634 = vpop.permute.xlu0 %633
    %635 = vset.pattern.permute.xlu0 1
    %636 = vperm.xlu0 %635, %v353
    %v637 = vpop.permute.xlu0 %636
    %638 = vset.pattern.permute.xlu0 1
    %639 = vperm.xlu0 %638, %v354
    %v640 = vpop.permute.xlu0 %639
    %641 = vset.pattern.permute.xlu0 1
    %642 = vperm.xlu0 %641, %v355
    %v643 = vpop.permute.xlu0 %642
    %644 = vset.pattern.permute.xlu0 1
    %645 = vperm.xlu0 %644, %v356
    %v646 = vpop.permute.xlu0 %645
    %vm647 = vcmp.eq.s32.totalorder %v502, %v505
    %vm648 = vcmp.eq.s32.totalorder %v502, %v508
    %vm649 = vcmp.eq.s32.totalorder %v502, %v511
    %vm650 = vcmp.eq.s32.totalorder %v502, %v514
    %vm651 = vcmp.eq.s32.totalorder %v502, %v517
    %vm652 = vcmp.eq.s32.totalorder %v502, %v520
    %vm653 = vcmp.eq.s32.totalorder %v502, %v523
    %vm654 = vcmp.eq.s32.totalorder %v502, %v526
    %vm655 = vcmp.eq.s32.totalorder %v502, %v529
    %vm656 = vcmp.eq.s32.totalorder %v502, %v532
    %vm657 = vcmp.eq.s32.totalorder %v502, %v535
    %vm658 = vcmp.eq.s32.totalorder %v502, %v538
    %vm659 = vcmp.eq.s32.totalorder %v502, %v541
    %vm660 = vcmp.eq.s32.totalorder %v502, %v544
    %vm661 = vcmp.eq.s32.totalorder %v502, %v547
    %vm662 = vcmp.eq.s32.totalorder %v502, %v550
    %vm663 = vcmp.eq.s32.totalorder %v502, %v553
    %vm664 = vcmp.eq.s32.totalorder %v502, %v556
    %vm665 = vcmp.eq.s32.totalorder %v502, %v559
    %vm666 = vcmp.eq.s32.totalorder %v502, %v562
    %vm667 = vcmp.eq.s32.totalorder %v502, %v565
    %vm668 = vcmp.eq.s32.totalorder %v502, %v568
    %vm669 = vcmp.eq.s32.totalorder %v502, %v571
    %vm670 = vcmp.eq.s32.totalorder %v502, %v574
    %vm671 = vcmp.eq.s32.totalorder %v502, %v577
    %vm672 = vcmp.eq.s32.totalorder %v502, %v580
    %vm673 = vcmp.eq.s32.totalorder %v502, %v583
    %vm674 = vcmp.eq.s32.totalorder %v502, %v586
    %vm675 = vcmp.eq.s32.totalorder %v502, %v589
    %vm676 = vcmp.eq.s32.totalorder %v502, %v592
    %vm677 = vcmp.eq.s32.totalorder %v502, %v595
    %vm678 = vcmp.eq.s32.totalorder %v502, %v598
    %vm679 = vcmp.eq.s32.totalorder %v502, %v601
    %vm680 = vcmp.eq.s32.totalorder %v502, %v604
    %vm681 = vcmp.eq.s32.totalorder %v502, %v607
    %vm682 = vcmp.eq.s32.totalorder %v502, %v610
    %vm683 = vcmp.eq.s32.totalorder %v502, %v613
    %vm684 = vcmp.eq.s32.totalorder %v502, %v616
    %vm685 = vcmp.eq.s32.totalorder %v502, %v619
    %vm686 = vcmp.eq.s32.totalorder %v502, %v622
    %vm687 = vcmp.eq.s32.totalorder %v502, %v625
    %vm688 = vcmp.eq.s32.totalorder %v502, %v628
    %vm689 = vcmp.eq.s32.totalorder %v502, %v631
    %vm690 = vcmp.eq.s32.totalorder %v502, %v634
    %vm691 = vcmp.eq.s32.totalorder %v502, %v637
    %vm692 = vcmp.eq.s32.totalorder %v502, %v640
    %vm693 = vcmp.eq.s32.totalorder %v502, %v643
    %vm694 = vcmp.eq.s32.totalorder %v502, %v646
    %695 = vset.pattern.permute.xlu0 2
    %696 = vperm.xlu0 %695, %v357
    %v697 = vpop.permute.xlu0 %696
    %698 = vset.pattern.permute.xlu0 2
    %699 = vperm.xlu0 %698, %v358
    %v700 = vpop.permute.xlu0 %699
    %701 = vset.pattern.permute.xlu0 2
    %702 = vperm.xlu0 %701, %v359
    %v703 = vpop.permute.xlu0 %702
    %704 = vset.pattern.permute.xlu0 2
    %705 = vperm.xlu0 %704, %v360
    %v706 = vpop.permute.xlu0 %705
    %707 = vset.pattern.permute.xlu0 2
    %708 = vperm.xlu0 %707, %v361
    %v709 = vpop.permute.xlu0 %708
    %710 = vset.pattern.permute.xlu0 2
    %711 = vperm.xlu0 %710, %v362
    %v712 = vpop.permute.xlu0 %711
    %713 = vset.pattern.permute.xlu0 2
    %714 = vperm.xlu0 %713, %v363
    %v715 = vpop.permute.xlu0 %714
    %716 = vset.pattern.permute.xlu0 2
    %717 = vperm.xlu0 %716, %v364
    %v718 = vpop.permute.xlu0 %717
    %719 = vset.pattern.permute.xlu0 2
    %720 = vperm.xlu0 %719, %v365
    %v721 = vpop.permute.xlu0 %720
    %722 = vset.pattern.permute.xlu0 2
    %723 = vperm.xlu0 %722, %v366
    %v724 = vpop.permute.xlu0 %723
    %725 = vset.pattern.permute.xlu0 2
    %726 = vperm.xlu0 %725, %v367
    %v727 = vpop.permute.xlu0 %726
    %728 = vset.pattern.permute.xlu0 2
    %729 = vperm.xlu0 %728, %v368
    %v730 = vpop.permute.xlu0 %729
    %731 = vset.pattern.permute.xlu0 2
    %732 = vperm.xlu0 %731, %v369
    %v733 = vpop.permute.xlu0 %732
    %734 = vset.pattern.permute.xlu0 2
    %735 = vperm.xlu0 %734, %v370
    %v736 = vpop.permute.xlu0 %735
    %737 = vset.pattern.permute.xlu0 2
    %738 = vperm.xlu0 %737, %v371
    %v739 = vpop.permute.xlu0 %738
    %740 = vset.pattern.permute.xlu0 2
    %741 = vperm.xlu0 %740, %v372
    %v742 = vpop.permute.xlu0 %741
    %743 = vset.pattern.permute.xlu0 2
    %744 = vperm.xlu0 %743, %v373
    %v745 = vpop.permute.xlu0 %744
    %746 = vset.pattern.permute.xlu0 2
    %747 = vperm.xlu0 %746, %v374
    %v748 = vpop.permute.xlu0 %747
    %749 = vset.pattern.permute.xlu0 2
    %750 = vperm.xlu0 %749, %v375
    %v751 = vpop.permute.xlu0 %750
    %752 = vset.pattern.permute.xlu0 2
    %753 = vperm.xlu0 %752, %v376
    %v754 = vpop.permute.xlu0 %753
    %755 = vset.pattern.permute.xlu0 2
    %756 = vperm.xlu0 %755, %v377
    %v757 = vpop.permute.xlu0 %756
    %758 = vset.pattern.permute.xlu0 2
    %759 = vperm.xlu0 %758, %v378
    %v760 = vpop.permute.xlu0 %759
    %761 = vset.pattern.permute.xlu0 2
    %762 = vperm.xlu0 %761, %v379
    %v763 = vpop.permute.xlu0 %762
    %764 = vset.pattern.permute.xlu0 2
    %765 = vperm.xlu0 %764, %v380
    %v766 = vpop.permute.xlu0 %765
    %767 = vset.pattern.permute.xlu0 2
    %768 = vperm.xlu0 %767, %v381
    %v769 = vpop.permute.xlu0 %768
    %770 = vset.pattern.permute.xlu0 2
    %771 = vperm.xlu0 %770, %v382
    %v772 = vpop.permute.xlu0 %771
    %773 = vset.pattern.permute.xlu0 2
    %774 = vperm.xlu0 %773, %v383
    %v775 = vpop.permute.xlu0 %774
    %776 = vset.pattern.permute.xlu0 2
    %777 = vperm.xlu0 %776, %v384
    %v778 = vpop.permute.xlu0 %777
    %779 = vset.pattern.permute.xlu0 2
    %780 = vperm.xlu0 %779, %v385
    %v781 = vpop.permute.xlu0 %780
    %782 = vset.pattern.permute.xlu0 2
    %783 = vperm.xlu0 %782, %v386
    %v784 = vpop.permute.xlu0 %783
    %785 = vset.pattern.permute.xlu0 2
    %786 = vperm.xlu0 %785, %v387
    %v787 = vpop.permute.xlu0 %786
    %788 = vset.pattern.permute.xlu0 2
    %789 = vperm.xlu0 %788, %v388
    %v790 = vpop.permute.xlu0 %789
    %791 = vset.pattern.permute.xlu0 2
    %792 = vperm.xlu0 %791, %v389
    %v793 = vpop.permute.xlu0 %792
    %794 = vset.pattern.permute.xlu0 2
    %795 = vperm.xlu0 %794, %v390
    %v796 = vpop.permute.xlu0 %795
    %797 = vset.pattern.permute.xlu0 2
    %798 = vperm.xlu0 %797, %v391
    %v799 = vpop.permute.xlu0 %798
    %800 = vset.pattern.permute.xlu0 2
    %801 = vperm.xlu0 %800, %v392
    %v802 = vpop.permute.xlu0 %801
    %803 = vset.pattern.permute.xlu0 2
    %804 = vperm.xlu0 %803, %v393
    %v805 = vpop.permute.xlu0 %804
    %806 = vset.pattern.permute.xlu0 2
    %807 = vperm.xlu0 %806, %v394
    %v808 = vpop.permute.xlu0 %807
    %809 = vset.pattern.permute.xlu0 2
    %810 = vperm.xlu0 %809, %v395
    %v811 = vpop.permute.xlu0 %810
    %812 = vset.pattern.permute.xlu0 2
    %813 = vperm.xlu0 %812, %v396
    %v814 = vpop.permute.xlu0 %813
    %815 = vset.pattern.permute.xlu0 2
    %816 = vperm.xlu0 %815, %v397
    %v817 = vpop.permute.xlu0 %816
    %818 = vset.pattern.permute.xlu0 2
    %819 = vperm.xlu0 %818, %v398
    %v820 = vpop.permute.xlu0 %819
    %821 = vset.pattern.permute.xlu0 2
    %822 = vperm.xlu0 %821, %v399
    %v823 = vpop.permute.xlu0 %822
    %824 = vset.pattern.permute.xlu0 2
    %825 = vperm.xlu0 %824, %v400
    %v826 = vpop.permute.xlu0 %825
    %827 = vset.pattern.permute.xlu0 2
    %828 = vperm.xlu0 %827, %v401
    %v829 = vpop.permute.xlu0 %828
    %830 = vset.pattern.permute.xlu0 2
    %831 = vperm.xlu0 %830, %v402
    %v832 = vpop.permute.xlu0 %831
    %833 = vset.pattern.permute.xlu0 2
    %834 = vperm.xlu0 %833, %v403
    %v835 = vpop.permute.xlu0 %834
    %836 = vset.pattern.permute.xlu0 2
    %837 = vperm.xlu0 %836, %v404
    %v838 = vpop.permute.xlu0 %837
    %vm839 = vcmp.eq.s32.totalorder %v502, %v697
    %vm840 = vcmp.eq.s32.totalorder %v502, %v700
    %vm841 = vcmp.eq.s32.totalorder %v502, %v703
    %vm842 = vcmp.eq.s32.totalorder %v502, %v706
    %vm843 = vcmp.eq.s32.totalorder %v502, %v709
    %vm844 = vcmp.eq.s32.totalorder %v502, %v712
    %vm845 = vcmp.eq.s32.totalorder %v502, %v715
    %vm846 = vcmp.eq.s32.totalorder %v502, %v718
    %vm847 = vcmp.eq.s32.totalorder %v502, %v721
    %vm848 = vcmp.eq.s32.totalorder %v502, %v724
    %vm849 = vcmp.eq.s32.totalorder %v502, %v727
    %vm850 = vcmp.eq.s32.totalorder %v502, %v730
    %vm851 = vcmp.eq.s32.totalorder %v502, %v733
    %vm852 = vcmp.eq.s32.totalorder %v502, %v736
    %vm853 = vcmp.eq.s32.totalorder %v502, %v739
    %vm854 = vcmp.eq.s32.totalorder %v502, %v742
    %vm855 = vcmp.eq.s32.totalorder %v502, %v745
    %vm856 = vcmp.eq.s32.totalorder %v502, %v748
    %vm857 = vcmp.eq.s32.totalorder %v502, %v751
    %vm858 = vcmp.eq.s32.totalorder %v502, %v754
    %vm859 = vcmp.eq.s32.totalorder %v502, %v757
    %vm860 = vcmp.eq.s32.totalorder %v502, %v760
    %vm861 = vcmp.eq.s32.totalorder %v502, %v763
    %vm862 = vcmp.eq.s32.totalorder %v502, %v766
    %vm863 = vcmp.eq.s32.totalorder %v502, %v769
    %vm864 = vcmp.eq.s32.totalorder %v502, %v772
    %vm865 = vcmp.eq.s32.totalorder %v502, %v775
    %vm866 = vcmp.eq.s32.totalorder %v502, %v778
    %vm867 = vcmp.eq.s32.totalorder %v502, %v781
    %vm868 = vcmp.eq.s32.totalorder %v502, %v784
    %vm869 = vcmp.eq.s32.totalorder %v502, %v787
    %vm870 = vcmp.eq.s32.totalorder %v502, %v790
    %vm871 = vcmp.eq.s32.totalorder %v502, %v793
    %vm872 = vcmp.eq.s32.totalorder %v502, %v796
    %vm873 = vcmp.eq.s32.totalorder %v502, %v799
    %vm874 = vcmp.eq.s32.totalorder %v502, %v802
    %vm875 = vcmp.eq.s32.totalorder %v502, %v805
    %vm876 = vcmp.eq.s32.totalorder %v502, %v808
    %vm877 = vcmp.eq.s32.totalorder %v502, %v811
    %vm878 = vcmp.eq.s32.totalorder %v502, %v814
    %vm879 = vcmp.eq.s32.totalorder %v502, %v817
    %vm880 = vcmp.eq.s32.totalorder %v502, %v820
    %vm881 = vcmp.eq.s32.totalorder %v502, %v823
    %vm882 = vcmp.eq.s32.totalorder %v502, %v826
    %vm883 = vcmp.eq.s32.totalorder %v502, %v829
    %vm884 = vcmp.eq.s32.totalorder %v502, %v832
    %vm885 = vcmp.eq.s32.totalorder %v502, %v835
    %vm886 = vcmp.eq.s32.totalorder %v502, %v838
    %vm887 = vmor %vm647, %vm839
    %vm888 = vmor %vm648, %vm840
    %vm889 = vmor %vm649, %vm841
    %vm890 = vmor %vm650, %vm842
    %vm891 = vmor %vm651, %vm843
    %vm892 = vmor %vm652, %vm844
    %vm893 = vmor %vm653, %vm845
    %vm894 = vmor %vm654, %vm846
    %vm895 = vmor %vm655, %vm847
    %vm896 = vmor %vm656, %vm848
    %vm897 = vmor %vm657, %vm849
    %vm898 = vmor %vm658, %vm850
    %vm899 = vmor %vm659, %vm851
    %vm900 = vmor %vm660, %vm852
    %vm901 = vmor %vm661, %vm853
    %vm902 = vmor %vm662, %vm854
    %vm903 = vmor %vm663, %vm855
    %vm904 = vmor %vm664, %vm856
    %vm905 = vmor %vm665, %vm857
    %vm906 = vmor %vm666, %vm858
    %vm907 = vmor %vm667, %vm859
    %vm908 = vmor %vm668, %vm860
    %vm909 = vmor %vm669, %vm861
    %vm910 = vmor %vm670, %vm862
    %vm911 = vmor %vm671, %vm863
    %vm912 = vmor %vm672, %vm864
    %vm913 = vmor %vm673, %vm865
    %vm914 = vmor %vm674, %vm866
    %vm915 = vmor %vm675, %vm867
    %vm916 = vmor %vm676, %vm868
    %vm917 = vmor %vm677, %vm869
    %vm918 = vmor %vm678, %vm870
    %vm919 = vmor %vm679, %vm871
    %vm920 = vmor %vm680, %vm872
    %vm921 = vmor %vm681, %vm873
    %vm922 = vmor %vm682, %vm874
    %vm923 = vmor %vm683, %vm875
    %vm924 = vmor %vm684, %vm876
    %vm925 = vmor %vm685, %vm877
    %vm926 = vmor %vm686, %vm878
    %vm927 = vmor %vm687, %vm879
    %vm928 = vmor %vm688, %vm880
    %vm929 = vmor %vm689, %vm881
    %vm930 = vmor %vm690, %vm882
    %vm931 = vmor %vm691, %vm883
    %vm932 = vmor %vm692, %vm884
    %vm933 = vmor %vm693, %vm885
    %vm934 = vmor %vm694, %vm886
    %935 = vset.pattern.permute.xlu0 3
    %936 = vperm.xlu0 %935, %v405
    %v937 = vpop.permute.xlu0 %936
    %938 = vset.pattern.permute.xlu0 3
    %939 = vperm.xlu0 %938, %v406
    %v940 = vpop.permute.xlu0 %939
    %941 = vset.pattern.permute.xlu0 3
    %942 = vperm.xlu0 %941, %v407
    %v943 = vpop.permute.xlu0 %942
    %944 = vset.pattern.permute.xlu0 3
    %945 = vperm.xlu0 %944, %v408
    %v946 = vpop.permute.xlu0 %945
    %947 = vset.pattern.permute.xlu0 3
    %948 = vperm.xlu0 %947, %v409
    %v949 = vpop.permute.xlu0 %948
    %950 = vset.pattern.permute.xlu0 3
    %951 = vperm.xlu0 %950, %v410
    %v952 = vpop.permute.xlu0 %951
    %953 = vset.pattern.permute.xlu0 3
    %954 = vperm.xlu0 %953, %v411
    %v955 = vpop.permute.xlu0 %954
    %956 = vset.pattern.permute.xlu0 3
    %957 = vperm.xlu0 %956, %v412
    %v958 = vpop.permute.xlu0 %957
    %959 = vset.pattern.permute.xlu0 3
    %960 = vperm.xlu0 %959, %v413
    %v961 = vpop.permute.xlu0 %960
    %962 = vset.pattern.permute.xlu0 3
    %963 = vperm.xlu0 %962, %v414
    %v964 = vpop.permute.xlu0 %963
    %965 = vset.pattern.permute.xlu0 3
    %966 = vperm.xlu0 %965, %v415
    %v967 = vpop.permute.xlu0 %966
    %968 = vset.pattern.permute.xlu0 3
    %969 = vperm.xlu0 %968, %v416
    %v970 = vpop.permute.xlu0 %969
    %971 = vset.pattern.permute.xlu0 3
    %972 = vperm.xlu0 %971, %v417
    %v973 = vpop.permute.xlu0 %972
    %974 = vset.pattern.permute.xlu0 3
    %975 = vperm.xlu0 %974, %v418
    %v976 = vpop.permute.xlu0 %975
    %977 = vset.pattern.permute.xlu0 3
    %978 = vperm.xlu0 %977, %v419
    %v979 = vpop.permute.xlu0 %978
    %980 = vset.pattern.permute.xlu0 3
    %981 = vperm.xlu0 %980, %v420
    %v982 = vpop.permute.xlu0 %981
    %983 = vset.pattern.permute.xlu0 3
    %984 = vperm.xlu0 %983, %v421
    %v985 = vpop.permute.xlu0 %984
    %986 = vset.pattern.permute.xlu0 3
    %987 = vperm.xlu0 %986, %v422
    %v988 = vpop.permute.xlu0 %987
    %989 = vset.pattern.permute.xlu0 3
    %990 = vperm.xlu0 %989, %v423
    %v991 = vpop.permute.xlu0 %990
    %992 = vset.pattern.permute.xlu0 3
    %993 = vperm.xlu0 %992, %v424
    %v994 = vpop.permute.xlu0 %993
    %995 = vset.pattern.permute.xlu0 3
    %996 = vperm.xlu0 %995, %v425
    %v997 = vpop.permute.xlu0 %996
    %998 = vset.pattern.permute.xlu0 3
    %999 = vperm.xlu0 %998, %v426
    %v1000 = vpop.permute.xlu0 %999
    %1001 = vset.pattern.permute.xlu0 3
    %1002 = vperm.xlu0 %1001, %v427
    %v1003 = vpop.permute.xlu0 %1002
    %1004 = vset.pattern.permute.xlu0 3
    %1005 = vperm.xlu0 %1004, %v428
    %v1006 = vpop.permute.xlu0 %1005
    %1007 = vset.pattern.permute.xlu0 3
    %1008 = vperm.xlu0 %1007, %v429
    %v1009 = vpop.permute.xlu0 %1008
    %1010 = vset.pattern.permute.xlu0 3
    %1011 = vperm.xlu0 %1010, %v430
    %v1012 = vpop.permute.xlu0 %1011
    %1013 = vset.pattern.permute.xlu0 3
    %1014 = vperm.xlu0 %1013, %v431
    %v1015 = vpop.permute.xlu0 %1014
    %1016 = vset.pattern.permute.xlu0 3
    %1017 = vperm.xlu0 %1016, %v432
    %v1018 = vpop.permute.xlu0 %1017
    %1019 = vset.pattern.permute.xlu0 3
    %1020 = vperm.xlu0 %1019, %v433
    %v1021 = vpop.permute.xlu0 %1020
    %1022 = vset.pattern.permute.xlu0 3
    %1023 = vperm.xlu0 %1022, %v434
    %v1024 = vpop.permute.xlu0 %1023
    %1025 = vset.pattern.permute.xlu0 3
    %1026 = vperm.xlu0 %1025, %v435
    %v1027 = vpop.permute.xlu0 %1026
    %1028 = vset.pattern.permute.xlu0 3
    %1029 = vperm.xlu0 %1028, %v436
    %v1030 = vpop.permute.xlu0 %1029
    %1031 = vset.pattern.permute.xlu0 3
    %1032 = vperm.xlu0 %1031, %v437
    %v1033 = vpop.permute.xlu0 %1032
    %1034 = vset.pattern.permute.xlu0 3
    %1035 = vperm.xlu0 %1034, %v438
    %v1036 = vpop.permute.xlu0 %1035
    %1037 = vset.pattern.permute.xlu0 3
    %1038 = vperm.xlu0 %1037, %v439
    %v1039 = vpop.permute.xlu0 %1038
    %1040 = vset.pattern.permute.xlu0 3
    %1041 = vperm.xlu0 %1040, %v440
    %v1042 = vpop.permute.xlu0 %1041
    %1043 = vset.pattern.permute.xlu0 3
    %1044 = vperm.xlu0 %1043, %v441
    %v1045 = vpop.permute.xlu0 %1044
    %1046 = vset.pattern.permute.xlu0 3
    %1047 = vperm.xlu0 %1046, %v442
    %v1048 = vpop.permute.xlu0 %1047
    %1049 = vset.pattern.permute.xlu0 3
    %1050 = vperm.xlu0 %1049, %v443
    %v1051 = vpop.permute.xlu0 %1050
    %1052 = vset.pattern.permute.xlu0 3
    %1053 = vperm.xlu0 %1052, %v444
    %v1054 = vpop.permute.xlu0 %1053
    %1055 = vset.pattern.permute.xlu0 3
    %1056 = vperm.xlu0 %1055, %v445
    %v1057 = vpop.permute.xlu0 %1056
    %1058 = vset.pattern.permute.xlu0 3
    %1059 = vperm.xlu0 %1058, %v446
    %v1060 = vpop.permute.xlu0 %1059
    %1061 = vset.pattern.permute.xlu0 3
    %1062 = vperm.xlu0 %1061, %v447
    %v1063 = vpop.permute.xlu0 %1062
    %1064 = vset.pattern.permute.xlu0 3
    %1065 = vperm.xlu0 %1064, %v448
    %v1066 = vpop.permute.xlu0 %1065
    %1067 = vset.pattern.permute.xlu0 3
    %1068 = vperm.xlu0 %1067, %v449
    %v1069 = vpop.permute.xlu0 %1068
    %1070 = vset.pattern.permute.xlu0 3
    %1071 = vperm.xlu0 %1070, %v450
    %v1072 = vpop.permute.xlu0 %1071
    %1073 = vset.pattern.permute.xlu0 3
    %1074 = vperm.xlu0 %1073, %v451
    %v1075 = vpop.permute.xlu0 %1074
    %1076 = vset.pattern.permute.xlu0 3
    %1077 = vperm.xlu0 %1076, %v452
    %v1078 = vpop.permute.xlu0 %1077
    %vm1079 = vcmp.eq.s32.totalorder %v502, %v937
    %vm1080 = vcmp.eq.s32.totalorder %v502, %v940
    %vm1081 = vcmp.eq.s32.totalorder %v502, %v943
    %vm1082 = vcmp.eq.s32.totalorder %v502, %v946
    %vm1083 = vcmp.eq.s32.totalorder %v502, %v949
    %vm1084 = vcmp.eq.s32.totalorder %v502, %v952
    %vm1085 = vcmp.eq.s32.totalorder %v502, %v955
    %vm1086 = vcmp.eq.s32.totalorder %v502, %v958
    %vm1087 = vcmp.eq.s32.totalorder %v502, %v961
    %vm1088 = vcmp.eq.s32.totalorder %v502, %v964
    %vm1089 = vcmp.eq.s32.totalorder %v502, %v967
    %vm1090 = vcmp.eq.s32.totalorder %v502, %v970
    %vm1091 = vcmp.eq.s32.totalorder %v502, %v973
    %vm1092 = vcmp.eq.s32.totalorder %v502, %v976
    %vm1093 = vcmp.eq.s32.totalorder %v502, %v979
    %vm1094 = vcmp.eq.s32.totalorder %v502, %v982
    %vm1095 = vcmp.eq.s32.totalorder %v502, %v985
    %vm1096 = vcmp.eq.s32.totalorder %v502, %v988
    %vm1097 = vcmp.eq.s32.totalorder %v502, %v991
    %vm1098 = vcmp.eq.s32.totalorder %v502, %v994
    %vm1099 = vcmp.eq.s32.totalorder %v502, %v997
    %vm1100 = vcmp.eq.s32.totalorder %v502, %v1000
    %vm1101 = vcmp.eq.s32.totalorder %v502, %v1003
    %vm1102 = vcmp.eq.s32.totalorder %v502, %v1006
    %vm1103 = vcmp.eq.s32.totalorder %v502, %v1009
    %vm1104 = vcmp.eq.s32.totalorder %v502, %v1012
    %vm1105 = vcmp.eq.s32.totalorder %v502, %v1015
    %vm1106 = vcmp.eq.s32.totalorder %v502, %v1018
    %vm1107 = vcmp.eq.s32.totalorder %v502, %v1021
    %vm1108 = vcmp.eq.s32.totalorder %v502, %v1024
    %vm1109 = vcmp.eq.s32.totalorder %v502, %v1027
    %vm1110 = vcmp.eq.s32.totalorder %v502, %v1030
    %vm1111 = vcmp.eq.s32.totalorder %v502, %v1033
    %vm1112 = vcmp.eq.s32.totalorder %v502, %v1036
    %vm1113 = vcmp.eq.s32.totalorder %v502, %v1039
    %vm1114 = vcmp.eq.s32.totalorder %v502, %v1042
    %vm1115 = vcmp.eq.s32.totalorder %v502, %v1045
    %vm1116 = vcmp.eq.s32.totalorder %v502, %v1048
    %vm1117 = vcmp.eq.s32.totalorder %v502, %v1051
    %vm1118 = vcmp.eq.s32.totalorder %v502, %v1054
    %vm1119 = vcmp.eq.s32.totalorder %v502, %v1057
    %vm1120 = vcmp.eq.s32.totalorder %v502, %v1060
    %vm1121 = vcmp.eq.s32.totalorder %v502, %v1063
    %vm1122 = vcmp.eq.s32.totalorder %v502, %v1066
    %vm1123 = vcmp.eq.s32.totalorder %v502, %v1069
    %vm1124 = vcmp.eq.s32.totalorder %v502, %v1072
    %vm1125 = vcmp.eq.s32.totalorder %v502, %v1075
    %vm1126 = vcmp.eq.s32.totalorder %v502, %v1078
    %vm1127 = vmor %vm887, %vm1079
    %vm1128 = vmor %vm888, %vm1080
    %vm1129 = vmor %vm889, %vm1081
    %vm1130 = vmor %vm890, %vm1082
    %vm1131 = vmor %vm891, %vm1083
    %vm1132 = vmor %vm892, %vm1084
    %vm1133 = vmor %vm893, %vm1085
    %vm1134 = vmor %vm894, %vm1086
    %vm1135 = vmor %vm895, %vm1087
    %vm1136 = vmor %vm896, %vm1088
    %vm1137 = vmor %vm897, %vm1089
    %vm1138 = vmor %vm898, %vm1090
    %vm1139 = vmor %vm899, %vm1091
    %vm1140 = vmor %vm900, %vm1092
    %vm1141 = vmor %vm901, %vm1093
    %vm1142 = vmor %vm902, %vm1094
    %vm1143 = vmor %vm903, %vm1095
    %vm1144 = vmor %vm904, %vm1096
    %vm1145 = vmor %vm905, %vm1097
    %vm1146 = vmor %vm906, %vm1098
    %vm1147 = vmor %vm907, %vm1099
    %vm1148 = vmor %vm908, %vm1100
    %vm1149 = vmor %vm909, %vm1101
    %vm1150 = vmor %vm910, %vm1102
    %vm1151 = vmor %vm911, %vm1103
    %vm1152 = vmor %vm912, %vm1104
    %vm1153 = vmor %vm913, %vm1105
    %vm1154 = vmor %vm914, %vm1106
    %vm1155 = vmor %vm915, %vm1107
    %vm1156 = vmor %vm916, %vm1108
    %vm1157 = vmor %vm917, %vm1109
    %vm1158 = vmor %vm918, %vm1110
    %vm1159 = vmor %vm919, %vm1111
    %vm1160 = vmor %vm920, %vm1112
    %vm1161 = vmor %vm921, %vm1113
    %vm1162 = vmor %vm922, %vm1114
    %vm1163 = vmor %vm923, %vm1115
    %vm1164 = vmor %vm924, %vm1116
    %vm1165 = vmor %vm925, %vm1117
    %vm1166 = vmor %vm926, %vm1118
    %vm1167 = vmor %vm927, %vm1119
    %vm1168 = vmor %vm928, %vm1120
    %vm1169 = vmor %vm929, %vm1121
    %vm1170 = vmor %vm930, %vm1122
    %vm1171 = vmor %vm931, %vm1123
    %vm1172 = vmor %vm932, %vm1124
    %vm1173 = vmor %vm933, %vm1125
    %vm1174 = vmor %vm934, %vm1126
    %1175 = vset.pattern.permute.xlu0 4
    %1176 = vperm.xlu0 %1175, %v453
    %v1177 = vpop.permute.xlu0 %1176
    %1178 = vset.pattern.permute.xlu0 4
    %1179 = vperm.xlu0 %1178, %v454
    %v1180 = vpop.permute.xlu0 %1179
    %1181 = vset.pattern.permute.xlu0 4
    %1182 = vperm.xlu0 %1181, %v455
    %v1183 = vpop.permute.xlu0 %1182
    %1184 = vset.pattern.permute.xlu0 4
    %1185 = vperm.xlu0 %1184, %v456
    %v1186 = vpop.permute.xlu0 %1185
    %1187 = vset.pattern.permute.xlu0 4
    %1188 = vperm.xlu0 %1187, %v457
    %v1189 = vpop.permute.xlu0 %1188
    %1190 = vset.pattern.permute.xlu0 4
    %1191 = vperm.xlu0 %1190, %v458
    %v1192 = vpop.permute.xlu0 %1191
    %1193 = vset.pattern.permute.xlu0 4
    %1194 = vperm.xlu0 %1193, %v459
    %v1195 = vpop.permute.xlu0 %1194
    %1196 = vset.pattern.permute.xlu0 4
    %1197 = vperm.xlu0 %1196, %v460
    %v1198 = vpop.permute.xlu0 %1197
    %1199 = vset.pattern.permute.xlu0 4
    %1200 = vperm.xlu0 %1199, %v461
    %v1201 = vpop.permute.xlu0 %1200
    %1202 = vset.pattern.permute.xlu0 4
    %1203 = vperm.xlu0 %1202, %v462
    %v1204 = vpop.permute.xlu0 %1203
    %1205 = vset.pattern.permute.xlu0 4
    %1206 = vperm.xlu0 %1205, %v463
    %v1207 = vpop.permute.xlu0 %1206
    %1208 = vset.pattern.permute.xlu0 4
    %1209 = vperm.xlu0 %1208, %v464
    %v1210 = vpop.permute.xlu0 %1209
    %1211 = vset.pattern.permute.xlu0 4
    %1212 = vperm.xlu0 %1211, %v465
    %v1213 = vpop.permute.xlu0 %1212
    %1214 = vset.pattern.permute.xlu0 4
    %1215 = vperm.xlu0 %1214, %v466
    %v1216 = vpop.permute.xlu0 %1215
    %1217 = vset.pattern.permute.xlu0 4
    %1218 = vperm.xlu0 %1217, %v467
    %v1219 = vpop.permute.xlu0 %1218
    %1220 = vset.pattern.permute.xlu0 4
    %1221 = vperm.xlu0 %1220, %v468
    %v1222 = vpop.permute.xlu0 %1221
    %1223 = vset.pattern.permute.xlu0 4
    %1224 = vperm.xlu0 %1223, %v469
    %v1225 = vpop.permute.xlu0 %1224
    %1226 = vset.pattern.permute.xlu0 4
    %1227 = vperm.xlu0 %1226, %v470
    %v1228 = vpop.permute.xlu0 %1227
    %1229 = vset.pattern.permute.xlu0 4
    %1230 = vperm.xlu0 %1229, %v471
    %v1231 = vpop.permute.xlu0 %1230
    %1232 = vset.pattern.permute.xlu0 4
    %1233 = vperm.xlu0 %1232, %v472
    %v1234 = vpop.permute.xlu0 %1233
    %1235 = vset.pattern.permute.xlu0 4
    %1236 = vperm.xlu0 %1235, %v473
    %v1237 = vpop.permute.xlu0 %1236
    %1238 = vset.pattern.permute.xlu0 4
    %1239 = vperm.xlu0 %1238, %v474
    %v1240 = vpop.permute.xlu0 %1239
    %1241 = vset.pattern.permute.xlu0 4
    %1242 = vperm.xlu0 %1241, %v475
    %v1243 = vpop.permute.xlu0 %1242
    %1244 = vset.pattern.permute.xlu0 4
    %1245 = vperm.xlu0 %1244, %v476
    %v1246 = vpop.permute.xlu0 %1245
    %1247 = vset.pattern.permute.xlu0 4
    %1248 = vperm.xlu0 %1247, %v477
    %v1249 = vpop.permute.xlu0 %1248
    %1250 = vset.pattern.permute.xlu0 4
    %1251 = vperm.xlu0 %1250, %v478
    %v1252 = vpop.permute.xlu0 %1251
    %1253 = vset.pattern.permute.xlu0 4
    %1254 = vperm.xlu0 %1253, %v479
    %v1255 = vpop.permute.xlu0 %1254
    %1256 = vset.pattern.permute.xlu0 4
    %1257 = vperm.xlu0 %1256, %v480
    %v1258 = vpop.permute.xlu0 %1257
    %1259 = vset.pattern.permute.xlu0 4
    %1260 = vperm.xlu0 %1259, %v481
    %v1261 = vpop.permute.xlu0 %1260
    %1262 = vset.pattern.permute.xlu0 4
    %1263 = vperm.xlu0 %1262, %v482
    %v1264 = vpop.permute.xlu0 %1263
    %1265 = vset.pattern.permute.xlu0 4
    %1266 = vperm.xlu0 %1265, %v483
    %v1267 = vpop.permute.xlu0 %1266
    %1268 = vset.pattern.permute.xlu0 4
    %1269 = vperm.xlu0 %1268, %v484
    %v1270 = vpop.permute.xlu0 %1269
    %1271 = vset.pattern.permute.xlu0 4
    %1272 = vperm.xlu0 %1271, %v485
    %v1273 = vpop.permute.xlu0 %1272
    %1274 = vset.pattern.permute.xlu0 4
    %1275 = vperm.xlu0 %1274, %v486
    %v1276 = vpop.permute.xlu0 %1275
    %1277 = vset.pattern.permute.xlu0 4
    %1278 = vperm.xlu0 %1277, %v487
    %v1279 = vpop.permute.xlu0 %1278
    %1280 = vset.pattern.permute.xlu0 4
    %1281 = vperm.xlu0 %1280, %v488
    %v1282 = vpop.permute.xlu0 %1281
    %1283 = vset.pattern.permute.xlu0 4
    %1284 = vperm.xlu0 %1283, %v489
    %v1285 = vpop.permute.xlu0 %1284
    %1286 = vset.pattern.permute.xlu0 4
    %1287 = vperm.xlu0 %1286, %v490
    %v1288 = vpop.permute.xlu0 %1287
    %1289 = vset.pattern.permute.xlu0 4
    %1290 = vperm.xlu0 %1289, %v491
    %v1291 = vpop.permute.xlu0 %1290
    %1292 = vset.pattern.permute.xlu0 4
    %1293 = vperm.xlu0 %1292, %v492
    %v1294 = vpop.permute.xlu0 %1293
    %1295 = vset.pattern.permute.xlu0 4
    %1296 = vperm.xlu0 %1295, %v493
    %v1297 = vpop.permute.xlu0 %1296
    %1298 = vset.pattern.permute.xlu0 4
    %1299 = vperm.xlu0 %1298, %v494
    %v1300 = vpop.permute.xlu0 %1299
    %1301 = vset.pattern.permute.xlu0 4
    %1302 = vperm.xlu0 %1301, %v495
    %v1303 = vpop.permute.xlu0 %1302
    %1304 = vset.pattern.permute.xlu0 4
    %1305 = vperm.xlu0 %1304, %v496
    %v1306 = vpop.permute.xlu0 %1305
    %1307 = vset.pattern.permute.xlu0 4
    %1308 = vperm.xlu0 %1307, %v497
    %v1309 = vpop.permute.xlu0 %1308
    %1310 = vset.pattern.permute.xlu0 4
    %1311 = vperm.xlu0 %1310, %v498
    %v1312 = vpop.permute.xlu0 %1311
    %1313 = vset.pattern.permute.xlu0 4
    %1314 = vperm.xlu0 %1313, %v499
    %v1315 = vpop.permute.xlu0 %1314
    %1316 = vset.pattern.permute.xlu0 4
    %1317 = vperm.xlu0 %1316, %v500
    %v1318 = vpop.permute.xlu0 %1317
    %vm1319 = vcmp.eq.s32.totalorder %v502, %v1177
    %vm1320 = vcmp.eq.s32.totalorder %v502, %v1180
    %vm1321 = vcmp.eq.s32.totalorder %v502, %v1183
    %vm1322 = vcmp.eq.s32.totalorder %v502, %v1186
    %vm1323 = vcmp.eq.s32.totalorder %v502, %v1189
    %vm1324 = vcmp.eq.s32.totalorder %v502, %v1192
    %vm1325 = vcmp.eq.s32.totalorder %v502, %v1195
    %vm1326 = vcmp.eq.s32.totalorder %v502, %v1198
    %vm1327 = vcmp.eq.s32.totalorder %v502, %v1201
    %vm1328 = vcmp.eq.s32.totalorder %v502, %v1204
    %vm1329 = vcmp.eq.s32.totalorder %v502, %v1207
    %vm1330 = vcmp.eq.s32.totalorder %v502, %v1210
    %vm1331 = vcmp.eq.s32.totalorder %v502, %v1213
    %vm1332 = vcmp.eq.s32.totalorder %v502, %v1216
    %vm1333 = vcmp.eq.s32.totalorder %v502, %v1219
    %vm1334 = vcmp.eq.s32.totalorder %v502, %v1222
    %vm1335 = vcmp.eq.s32.totalorder %v502, %v1225
    %vm1336 = vcmp.eq.s32.totalorder %v502, %v1228
    %vm1337 = vcmp.eq.s32.totalorder %v502, %v1231
    %vm1338 = vcmp.eq.s32.totalorder %v502, %v1234
    %vm1339 = vcmp.eq.s32.totalorder %v502, %v1237
    %vm1340 = vcmp.eq.s32.totalorder %v502, %v1240
    %vm1341 = vcmp.eq.s32.totalorder %v502, %v1243
    %vm1342 = vcmp.eq.s32.totalorder %v502, %v1246
    %vm1343 = vcmp.eq.s32.totalorder %v502, %v1249
    %vm1344 = vcmp.eq.s32.totalorder %v502, %v1252
    %vm1345 = vcmp.eq.s32.totalorder %v502, %v1255
    %vm1346 = vcmp.eq.s32.totalorder %v502, %v1258
    %vm1347 = vcmp.eq.s32.totalorder %v502, %v1261
    %vm1348 = vcmp.eq.s32.totalorder %v502, %v1264
    %vm1349 = vcmp.eq.s32.totalorder %v502, %v1267
    %vm1350 = vcmp.eq.s32.totalorder %v502, %v1270
    %vm1351 = vcmp.eq.s32.totalorder %v502, %v1273
    %vm1352 = vcmp.eq.s32.totalorder %v502, %v1276
    %vm1353 = vcmp.eq.s32.totalorder %v502, %v1279
    %vm1354 = vcmp.eq.s32.totalorder %v502, %v1282
    %vm1355 = vcmp.eq.s32.totalorder %v502, %v1285
    %vm1356 = vcmp.eq.s32.totalorder %v502, %v1288
    %vm1357 = vcmp.eq.s32.totalorder %v502, %v1291
    %vm1358 = vcmp.eq.s32.totalorder %v502, %v1294
    %vm1359 = vcmp.eq.s32.totalorder %v502, %v1297
    %vm1360 = vcmp.eq.s32.totalorder %v502, %v1300
    %vm1361 = vcmp.eq.s32.totalorder %v502, %v1303
    %vm1362 = vcmp.eq.s32.totalorder %v502, %v1306
    %vm1363 = vcmp.eq.s32.totalorder %v502, %v1309
    %vm1364 = vcmp.eq.s32.totalorder %v502, %v1312
    %vm1365 = vcmp.eq.s32.totalorder %v502, %v1315
    %vm1366 = vcmp.eq.s32.totalorder %v502, %v1318
    %vm1367 = vmor %vm1127, %vm1319
    %vm1368 = vmor %vm1128, %vm1320
    %vm1369 = vmor %vm1129, %vm1321
    %vm1370 = vmor %vm1130, %vm1322
    %vm1371 = vmor %vm1131, %vm1323
    %vm1372 = vmor %vm1132, %vm1324
    %vm1373 = vmor %vm1133, %vm1325
    %vm1374 = vmor %vm1134, %vm1326
    %vm1375 = vmor %vm1135, %vm1327
    %vm1376 = vmor %vm1136, %vm1328
    %vm1377 = vmor %vm1137, %vm1329
    %vm1378 = vmor %vm1138, %vm1330
    %vm1379 = vmor %vm1139, %vm1331
    %vm1380 = vmor %vm1140, %vm1332
    %vm1381 = vmor %vm1141, %vm1333
    %vm1382 = vmor %vm1142, %vm1334
    %vm1383 = vmor %vm1143, %vm1335
    %vm1384 = vmor %vm1144, %vm1336
    %vm1385 = vmor %vm1145, %vm1337
    %vm1386 = vmor %vm1146, %vm1338
    %vm1387 = vmor %vm1147, %vm1339
    %vm1388 = vmor %vm1148, %vm1340
    %vm1389 = vmor %vm1149, %vm1341
    %vm1390 = vmor %vm1150, %vm1342
    %vm1391 = vmor %vm1151, %vm1343
    %vm1392 = vmor %vm1152, %vm1344
    %vm1393 = vmor %vm1153, %vm1345
    %vm1394 = vmor %vm1154, %vm1346
    %vm1395 = vmor %vm1155, %vm1347
    %vm1396 = vmor %vm1156, %vm1348
    %vm1397 = vmor %vm1157, %vm1349
    %vm1398 = vmor %vm1158, %vm1350
    %vm1399 = vmor %vm1159, %vm1351
    %vm1400 = vmor %vm1160, %vm1352
    %vm1401 = vmor %vm1161, %vm1353
    %vm1402 = vmor %vm1162, %vm1354
    %vm1403 = vmor %vm1163, %vm1355
    %vm1404 = vmor %vm1164, %vm1356
    %vm1405 = vmor %vm1165, %vm1357
    %vm1406 = vmor %vm1166, %vm1358
    %vm1407 = vmor %vm1167, %vm1359
    %vm1408 = vmor %vm1168, %vm1360
    %vm1409 = vmor %vm1169, %vm1361
    %vm1410 = vmor %vm1170, %vm1362
    %vm1411 = vmor %vm1171, %vm1363
    %vm1412 = vmor %vm1172, %vm1364
    %vm1413 = vmor %vm1173, %vm1365
    %vm1414 = vmor %vm1174, %vm1366
    %v1415 = vsel %vm1367, 1, 0
    %v1416 = vsel %vm1368, 1, 0
    %v1417 = vsel %vm1369, 1, 0
    %v1418 = vsel %vm1370, 1, 0
    %v1419 = vsel %vm1371, 1, 0
    %v1420 = vsel %vm1372, 1, 0
    %v1421 = vsel %vm1373, 1, 0
    %v1422 = vsel %vm1374, 1, 0
    %v1423 = vsel %vm1375, 1, 0
    %v1424 = vsel %vm1376, 1, 0
    %v1425 = vsel %vm1377, 1, 0
    %v1426 = vsel %vm1378, 1, 0
    %v1427 = vsel %vm1379, 1, 0
    %v1428 = vsel %vm1380, 1, 0
    %v1429 = vsel %vm1381, 1, 0
    %v1430 = vsel %vm1382, 1, 0
    %v1431 = vsel %vm1383, 1, 0
    %v1432 = vsel %vm1384, 1, 0
    %v1433 = vsel %vm1385, 1, 0
    %v1434 = vsel %vm1386, 1, 0
    %v1435 = vsel %vm1387, 1, 0
    %v1436 = vsel %vm1388, 1, 0
    %v1437 = vsel %vm1389, 1, 0
    %v1438 = vsel %vm1390, 1, 0
    %v1439 = vsel %vm1391, 1, 0
    %v1440 = vsel %vm1392, 1, 0
    %v1441 = vsel %vm1393, 1, 0
    %v1442 = vsel %vm1394, 1, 0
    %v1443 = vsel %vm1395, 1, 0
    %v1444 = vsel %vm1396, 1, 0
    %v1445 = vsel %vm1397, 1, 0
    %v1446 = vsel %vm1398, 1, 0
    %v1447 = vsel %vm1399, 1, 0
    %v1448 = vsel %vm1400, 1, 0
    %v1449 = vsel %vm1401, 1, 0
    %v1450 = vsel %vm1402, 1, 0
    %v1451 = vsel %vm1403, 1, 0
    %v1452 = vsel %vm1404, 1, 0
    %v1453 = vsel %vm1405, 1, 0
    %v1454 = vsel %vm1406, 1, 0
    %v1455 = vsel %vm1407, 1, 0
    %v1456 = vsel %vm1408, 1, 0
    %v1457 = vsel %vm1409, 1, 0
    %v1458 = vsel %vm1410, 1, 0
    %v1459 = vsel %vm1411, 1, 0
    %v1460 = vsel %vm1412, 1, 0
    %v1461 = vsel %vm1413, 1, 0
    %v1462 = vsel %vm1414, 1, 0
    %v1463 = vcvt.s32.f32 %v1415
    %v1464 = vcvt.s32.f32 %v1416
    %v1465 = vcvt.s32.f32 %v1417
    %v1466 = vcvt.s32.f32 %v1418
    %v1467 = vcvt.s32.f32 %v1419
    %v1468 = vcvt.s32.f32 %v1420
    %v1469 = vcvt.s32.f32 %v1421
    %v1470 = vcvt.s32.f32 %v1422
    %v1471 = vcvt.s32.f32 %v1423
    %v1472 = vcvt.s32.f32 %v1424
    %v1473 = vcvt.s32.f32 %v1425
    %v1474 = vcvt.s32.f32 %v1426
    %v1475 = vcvt.s32.f32 %v1427
    %v1476 = vcvt.s32.f32 %v1428
    %v1477 = vcvt.s32.f32 %v1429
    %v1478 = vcvt.s32.f32 %v1430
    %v1479 = vcvt.s32.f32 %v1431
    %v1480 = vcvt.s32.f32 %v1432
    %v1481 = vcvt.s32.f32 %v1433
    %v1482 = vcvt.s32.f32 %v1434
    %v1483 = vcvt.s32.f32 %v1435
    %v1484 = vcvt.s32.f32 %v1436
    %v1485 = vcvt.s32.f32 %v1437
    %v1486 = vcvt.s32.f32 %v1438
    %v1487 = vcvt.s32.f32 %v1439
    %v1488 = vcvt.s32.f32 %v1440
    %v1489 = vcvt.s32.f32 %v1441
    %v1490 = vcvt.s32.f32 %v1442
    %v1491 = vcvt.s32.f32 %v1443
    %v1492 = vcvt.s32.f32 %v1444
    %v1493 = vcvt.s32.f32 %v1445
    %v1494 = vcvt.s32.f32 %v1446
    %v1495 = vcvt.s32.f32 %v1447
    %v1496 = vcvt.s32.f32 %v1448
    %v1497 = vcvt.s32.f32 %v1449
    %v1498 = vcvt.s32.f32 %v1450
    %v1499 = vcvt.s32.f32 %v1451
    %v1500 = vcvt.s32.f32 %v1452
    %v1501 = vcvt.s32.f32 %v1453
    %v1502 = vcvt.s32.f32 %v1454
    %v1503 = vcvt.s32.f32 %v1455
    %v1504 = vcvt.s32.f32 %v1456
    %v1505 = vcvt.s32.f32 %v1457
    %v1506 = vcvt.s32.f32 %v1458
    %v1507 = vcvt.s32.f32 %v1459
    %v1508 = vcvt.s32.f32 %v1460
    %v1509 = vcvt.s32.f32 %v1461
    %v1510 = vcvt.s32.f32 %v1462
    %vm1511 = vcmp.lt.s32.totalorder %v502, 1
    %1513 = vset.pattern.permute.xlu0 0
    %1514 = vperm.xlu0 %1513, %v21
    %v1515 = vpop.permute.xlu0 %1514
    %1518 = vset.pattern.permute.xlu0 0
    %1519 = vperm.xlu0 %1518, %v22
    %v1520 = vpop.permute.xlu0 %1519
    %1523 = vset.pattern.permute.xlu0 0
    %1524 = vperm.xlu0 %1523, %v23
    %v1525 = vpop.permute.xlu0 %1524
    %1528 = vset.pattern.permute.xlu0 0
    %1529 = vperm.xlu0 %1528, %v24
    %v1530 = vpop.permute.xlu0 %1529
    %1533 = vset.pattern.permute.xlu0 0
    %1534 = vperm.xlu0 %1533, %v25
    %v1535 = vpop.permute.xlu0 %1534
    %1538 = vset.pattern.permute.xlu0 0
    %1539 = vperm.xlu0 %1538, %v26
    %v1540 = vpop.permute.xlu0 %1539
    %1543 = vset.pattern.permute.xlu0 0
    %1544 = vperm.xlu0 %1543, %v27
    %v1545 = vpop.permute.xlu0 %1544
    %1548 = vset.pattern.permute.xlu0 0
    %1549 = vperm.xlu0 %1548, %v28
    %v1550 = vpop.permute.xlu0 %1549
    %1553 = vset.pattern.permute.xlu0 0
    %1554 = vperm.xlu0 %1553, %v29
    %v1555 = vpop.permute.xlu0 %1554
    %1558 = vset.pattern.permute.xlu0 0
    %1559 = vperm.xlu0 %1558, %v30
    %v1560 = vpop.permute.xlu0 %1559
    %1563 = vset.pattern.permute.xlu0 0
    %1564 = vperm.xlu0 %1563, %v31
    %v1565 = vpop.permute.xlu0 %1564
    %1568 = vset.pattern.permute.xlu0 0
    %1569 = vperm.xlu0 %1568, %v32
    %v1570 = vpop.permute.xlu0 %1569
    %1573 = vset.pattern.permute.xlu0 0
    %1574 = vperm.xlu0 %1573, %v33
    %v1575 = vpop.permute.xlu0 %1574
    %1578 = vset.pattern.permute.xlu0 0
    %1579 = vperm.xlu0 %1578, %v34
    %v1580 = vpop.permute.xlu0 %1579
    %1583 = vset.pattern.permute.xlu0 0
    %1584 = vperm.xlu0 %1583, %v35
    %v1585 = vpop.permute.xlu0 %1584
    %1588 = vset.pattern.permute.xlu0 0
    %1589 = vperm.xlu0 %1588, %v36
    %v1590 = vpop.permute.xlu0 %1589
    %1593 = vset.pattern.permute.xlu0 0
    %1594 = vperm.xlu0 %1593, %v37
    %v1595 = vpop.permute.xlu0 %1594
    %1598 = vset.pattern.permute.xlu0 0
    %1599 = vperm.xlu0 %1598, %v38
    %v1600 = vpop.permute.xlu0 %1599
    %1603 = vset.pattern.permute.xlu0 0
    %1604 = vperm.xlu0 %1603, %v39
    %v1605 = vpop.permute.xlu0 %1604
    %1608 = vset.pattern.permute.xlu0 0
    %1609 = vperm.xlu0 %1608, %v40
    %v1610 = vpop.permute.xlu0 %1609
    %1613 = vset.pattern.permute.xlu0 0
    %1614 = vperm.xlu0 %1613, %v41
    %v1615 = vpop.permute.xlu0 %1614
    %1618 = vset.pattern.permute.xlu0 0
    %1619 = vperm.xlu0 %1618, %v42
    %v1620 = vpop.permute.xlu0 %1619
    %1623 = vset.pattern.permute.xlu0 0
    %1624 = vperm.xlu0 %1623, %v43
    %v1625 = vpop.permute.xlu0 %1624
    %1628 = vset.pattern.permute.xlu0 0
    %1629 = vperm.xlu0 %1628, %v44
    %v1630 = vpop.permute.xlu0 %1629
    %1633 = vset.pattern.permute.xlu0 0
    %1634 = vperm.xlu0 %1633, %v45
    %v1635 = vpop.permute.xlu0 %1634
    %1638 = vset.pattern.permute.xlu0 0
    %1639 = vperm.xlu0 %1638, %v46
    %v1640 = vpop.permute.xlu0 %1639
    %1643 = vset.pattern.permute.xlu0 0
    %1644 = vperm.xlu0 %1643, %v47
    %v1645 = vpop.permute.xlu0 %1644
    %1648 = vset.pattern.permute.xlu0 0
    %1649 = vperm.xlu0 %1648, %v48
    %v1650 = vpop.permute.xlu0 %1649
    %1653 = vset.pattern.permute.xlu0 0
    %1654 = vperm.xlu0 %1653, %v49
    %v1655 = vpop.permute.xlu0 %1654
    %1658 = vset.pattern.permute.xlu0 0
    %1659 = vperm.xlu0 %1658, %v50
    %v1660 = vpop.permute.xlu0 %1659
    %1663 = vset.pattern.permute.xlu0 0
    %1664 = vperm.xlu0 %1663, %v51
    %v1665 = vpop.permute.xlu0 %1664
    %1668 = vset.pattern.permute.xlu0 0
    %1669 = vperm.xlu0 %1668, %v52
    %v1670 = vpop.permute.xlu0 %1669
    %1673 = vset.pattern.permute.xlu0 0
    %1674 = vperm.xlu0 %1673, %v53
    %v1675 = vpop.permute.xlu0 %1674
    %1678 = vset.pattern.permute.xlu0 0
    %1679 = vperm.xlu0 %1678, %v54
    %v1680 = vpop.permute.xlu0 %1679
    %1683 = vset.pattern.permute.xlu0 0
    %1684 = vperm.xlu0 %1683, %v55
    %v1685 = vpop.permute.xlu0 %1684
    %1688 = vset.pattern.permute.xlu0 0
    %1689 = vperm.xlu0 %1688, %v56
    %v1690 = vpop.permute.xlu0 %1689
    %1693 = vset.pattern.permute.xlu0 0
    %1694 = vperm.xlu0 %1693, %v57
    %v1695 = vpop.permute.xlu0 %1694
    %1698 = vset.pattern.permute.xlu0 0
    %1699 = vperm.xlu0 %1698, %v58
    %v1700 = vpop.permute.xlu0 %1699
    %1703 = vset.pattern.permute.xlu0 0
    %1704 = vperm.xlu0 %1703, %v59
    %v1705 = vpop.permute.xlu0 %1704
    %1708 = vset.pattern.permute.xlu0 0
    %1709 = vperm.xlu0 %1708, %v60
    %v1710 = vpop.permute.xlu0 %1709
    %1713 = vset.pattern.permute.xlu0 0
    %1714 = vperm.xlu0 %1713, %v61
    %v1715 = vpop.permute.xlu0 %1714
    %1718 = vset.pattern.permute.xlu0 0
    %1719 = vperm.xlu0 %1718, %v62
    %v1720 = vpop.permute.xlu0 %1719
    %1723 = vset.pattern.permute.xlu0 0
    %1724 = vperm.xlu0 %1723, %v63
    %v1725 = vpop.permute.xlu0 %1724
    %1728 = vset.pattern.permute.xlu0 0
    %1729 = vperm.xlu0 %1728, %v64
    %v1730 = vpop.permute.xlu0 %1729
    %1733 = vset.pattern.permute.xlu0 0
    %1734 = vperm.xlu0 %1733, %v65
    %v1735 = vpop.permute.xlu0 %1734
    %1738 = vset.pattern.permute.xlu0 0
    %1739 = vperm.xlu0 %1738, %v66
    %v1740 = vpop.permute.xlu0 %1739
    %1743 = vset.pattern.permute.xlu0 0
    %1744 = vperm.xlu0 %1743, %v67
    %v1745 = vpop.permute.xlu0 %1744
    %1748 = vset.pattern.permute.xlu0 0
    %1749 = vperm.xlu0 %1748, %v68
    %v1750 = vpop.permute.xlu0 %1749
    %v1752 = vsel %vm1511, %v1515, %v1463
    %v1753 = vsel %vm1511, %v1520, %v1464
    %v1754 = vsel %vm1511, %v1525, %v1465
    %v1755 = vsel %vm1511, %v1530, %v1466
    %v1756 = vsel %vm1511, %v1535, %v1467
    %v1757 = vsel %vm1511, %v1540, %v1468
    %v1758 = vsel %vm1511, %v1545, %v1469
    %v1759 = vsel %vm1511, %v1550, %v1470
    %v1760 = vsel %vm1511, %v1555, %v1471
    %v1761 = vsel %vm1511, %v1560, %v1472
    %v1762 = vsel %vm1511, %v1565, %v1473
    %v1763 = vsel %vm1511, %v1570, %v1474
    %v1764 = vsel %vm1511, %v1575, %v1475
    %v1765 = vsel %vm1511, %v1580, %v1476
    %v1766 = vsel %vm1511, %v1585, %v1477
    %v1767 = vsel %vm1511, %v1590, %v1478
    %v1768 = vsel %vm1511, %v1595, %v1479
    %v1769 = vsel %vm1511, %v1600, %v1480
    %v1770 = vsel %vm1511, %v1605, %v1481
    %v1771 = vsel %vm1511, %v1610, %v1482
    %v1772 = vsel %vm1511, %v1615, %v1483
    %v1773 = vsel %vm1511, %v1620, %v1484
    %v1774 = vsel %vm1511, %v1625, %v1485
    %v1775 = vsel %vm1511, %v1630, %v1486
    %v1776 = vsel %vm1511, %v1635, %v1487
    %v1777 = vsel %vm1511, %v1640, %v1488
    %v1778 = vsel %vm1511, %v1645, %v1489
    %v1779 = vsel %vm1511, %v1650, %v1490
    %v1780 = vsel %vm1511, %v1655, %v1491
    %v1781 = vsel %vm1511, %v1660, %v1492
    %v1782 = vsel %vm1511, %v1665, %v1493
    %v1783 = vsel %vm1511, %v1670, %v1494
    %v1784 = vsel %vm1511, %v1675, %v1495
    %v1785 = vsel %vm1511, %v1680, %v1496
    %v1786 = vsel %vm1511, %v1685, %v1497
    %v1787 = vsel %vm1511, %v1690, %v1498
    %v1788 = vsel %vm1511, %v1695, %v1499
    %v1789 = vsel %vm1511, %v1700, %v1500
    %v1790 = vsel %vm1511, %v1705, %v1501
    %v1791 = vsel %vm1511, %v1710, %v1502
    %v1792 = vsel %vm1511, %v1715, %v1503
    %v1793 = vsel %vm1511, %v1720, %v1504
    %v1794 = vsel %vm1511, %v1725, %v1505
    %v1795 = vsel %vm1511, %v1730, %v1506
    %v1796 = vsel %vm1511, %v1735, %v1507
    %v1797 = vsel %vm1511, %v1740, %v1508
    %v1798 = vsel %vm1511, %v1745, %v1509
    %v1799 = vsel %vm1511, %v1750, %v1510
    %v1800 = vld [vmem:[%s1] sm:$0xff]
    %v1801 = vld [vmem:[%s1 + $0x8] sm:$0xff]
    %v1802 = vld [vmem:[%s1 + $0x10] sm:$0xff]
    %v1803 = vld [vmem:[%s1 + $0x18] sm:$0xff]
    %v1804 = vld [vmem:[%s1 + $0x20] sm:$0xf]
    %v1805 = vld [vmem:[%s2] sm:$0x1]
    %v1807 = vlaneseq
    %v1808 = vshrl.u32 %v1807, 7
    %v1809 = vsub.s32 0, %v1808
    %v1810 = vrot.slane %v1805, %v1809
    %vm1812 = vcmask 293888
    %v1814 = vsel %vm1812, %v1752, 0
    %v1817 = vsel %vm1812, %v1753, 0
    %v1820 = vsel %vm1812, %v1754, 0
    %v1823 = vsel %vm1812, %v1755, 0
    %v1826 = vsel %vm1812, %v1756, 0
    %v1829 = vsel %vm1812, %v1757, 0
    %v1832 = vsel %vm1812, %v1758, 0
    %v1835 = vsel %vm1812, %v1759, 0
    %v1838 = vsel %vm1812, %v1760, 0
    %v1841 = vsel %vm1812, %v1761, 0
    %v1844 = vsel %vm1812, %v1762, 0
    %v1847 = vsel %vm1812, %v1763, 0
    %v1850 = vsel %vm1812, %v1764, 0
    %v1853 = vsel %vm1812, %v1765, 0
    %v1856 = vsel %vm1812, %v1766, 0
    %v1859 = vsel %vm1812, %v1767, 0
    %v1862 = vsel %vm1812, %v1768, 0
    %v1865 = vsel %vm1812, %v1769, 0
    %v1868 = vsel %vm1812, %v1770, 0
    %v1871 = vsel %vm1812, %v1771, 0
    %v1874 = vsel %vm1812, %v1772, 0
    %v1877 = vsel %vm1812, %v1773, 0
    %v1880 = vsel %vm1812, %v1774, 0
    %v1883 = vsel %vm1812, %v1775, 0
    %v1886 = vsel %vm1812, %v1776, 0
    %v1889 = vsel %vm1812, %v1777, 0
    %v1892 = vsel %vm1812, %v1778, 0
    %v1895 = vsel %vm1812, %v1779, 0
    %v1898 = vsel %vm1812, %v1780, 0
    %v1901 = vsel %vm1812, %v1781, 0
    %v1904 = vsel %vm1812, %v1782, 0
    %v1907 = vsel %vm1812, %v1783, 0
    %v1910 = vsel %vm1812, %v1784, 0
    %v1913 = vsel %vm1812, %v1785, 0
    %v1916 = vsel %vm1812, %v1786, 0
    %v1919 = vsel %vm1812, %v1787, 0
    %v1922 = vsel %vm1812, %v1788, 0
    %v1925 = vsel %vm1812, %v1789, 0
    %v1928 = vsel %vm1812, %v1790, 0
    %v1931 = vsel %vm1812, %v1791, 0
    %v1934 = vsel %vm1812, %v1792, 0
    %v1937 = vsel %vm1812, %v1793, 0
    %v1940 = vsel %vm1812, %v1794, 0
    %v1943 = vsel %vm1812, %v1795, 0
    %v1946 = vsel %vm1812, %v1796, 0
    %v1949 = vsel %vm1812, %v1797, 0
    %v1952 = vsel %vm1812, %v1798, 0
    %v1955 = vsel %vm1812, %v1799, 0
    %vm1957 = vcmask 1043456
    %v1959 = vsel %vm1957, %v1804, 0
    %1961 = vmatprep.subr.mxu0 0.0
    %1962 = vmatpush1.msra.mxu0 0.0
    %1963 = vmatprep.subr.mxu0 0.0
    %1964 = vmatpush1.msra.mxu0 0.0
    %1965 = vmatprep.subr.mxu0 0.0
    %1966 = vmatpush1.msra.mxu0 0.0
    %1967 = vmatprep.subr.mxu0 0.0
    %1968 = vmatpush1.msra.mxu0 0.0
    %1969 = vmatprep.subr.mxu0 0.0
    %1970 = vmatpush1.msra.mxu0 0.0
    %1971 = vmatprep.subr.mxu0 0.0
    %1972 = vmatpush1.msra.mxu0 0.0
    %1973 = vmatprep.subr.mxu0 0.0
    %1974 = vmatpush1.msra.mxu0 0.0
    %1975 = vmatprep.subr.mxu0 0.0
    %1976 = vmatpush1.msra.mxu0 0.0
    %1977 = vmatprep.subr.mxu0 0.0
    %1978 = vmatpush1.msra.mxu0 0.0
    %1979 = vmatprep.subr.mxu0 0.0
    %1980 = vmatpush1.msra.mxu0 0.0
    %1981 = vmatprep.subr.mxu0 0.0
    %1982 = vmatpush1.msra.mxu0 0.0
    %1983 = vmatprep.subr.mxu0 0.0
    %1984 = vmatpush1.msra.mxu0 %v1959
    %1985 = vmatprep.subr.mxu0 0.0
    %1986 = vmatpush1.msra.mxu0 %v1803
    %1987 = vmatprep.subr.mxu0 0.0
    %1988 = vmatpush1.msra.mxu0 %v1802
    %1989 = vmatprep.subr.mxu0 0.0
    %1990 = vmatpush1.msra.mxu0 %v1801
    %1991 = vmatprep.subr.mxu0 0.0
    %1992 = vmatpush1.msra.mxu0 %v1800
    %1993 = vmatprep.subr.mxu0 0.0
    %1994 = vmatpush2.msra.mxu0 0.0
    %1995 = vmatprep.subr.mxu0 0.0
    %1996 = vmatpush2.msra.mxu0 0.0
    %1997 = vmatprep.subr.mxu0 0.0
    %1998 = vmatpush2.msra.mxu0 0.0
    %1999 = vmatprep.subr.mxu0 0.0
    %2000 = vmatpush2.msra.mxu0 0.0
    %2001 = vmatprep.subr.mxu0 0.0
    %2002 = vmatpush2.msra.mxu0 0.0
    %2003 = vmatprep.subr.mxu0 0.0
    %2004 = vmatpush2.msra.mxu0 0.0
    %2005 = vmatprep.subr.mxu0 0.0
    %2006 = vmatpush2.msra.mxu0 0.0
    %2007 = vmatprep.subr.mxu0 0.0
    %2008 = vmatpush2.msra.mxu0 0.0
    %2009 = vmatprep.subr.mxu0 0.0
    %2010 = vmatpush2.msra.mxu0 0.0
    %2011 = vmatprep.subr.mxu0 0.0
    %2012 = vmatpush2.msra.mxu0 0.0
    %2013 = vmatprep.subr.mxu0 0.0
    %2014 = vmatpush2.msra.mxu0 0.0
    %2015 = vmatprep.subr.mxu0 0.0
    %2016 = vmatpush2.msra.mxu0 0.0
    %2017 = vmatprep.subr.mxu0 0.0
    %2018 = vmatpush2.msra.mxu0 0.0
    %2019 = vmatprep.subr.mxu0 0.0
    %2020 = vmatpush2.msra.mxu0 0.0
    %2021 = vmatprep.subr.mxu0 0.0
    %2022 = vmatpush2.msra.mxu0 0.0
    %2023 = vmatprep.subr.mxu0 0.0
    %2024 = vmatpush2.msra.mxu0 0.0
    %2025 = vmatprep.mubr.f32.mxu0 0.0
    %2026 = vmatmul.mubr.f32.gmra.mxu0 %v1814
    %v2027 = vpop.f32.mrf.mxu0
    %v2028 = vadd.f32 %v1810, %v2027
    %v2029 = vpop.f32.mrf.mxu0
    %2030 = vmatprep.mubr.f32.mxu0 0.0
    %2031 = vmatmul.mubr.f32.gmra.mxu0 %v1817
    %v2032 = vpop.f32.mrf.mxu0
    %v2033 = vadd.f32 %v1810, %v2032
    %v2034 = vpop.f32.mrf.mxu0
    %2035 = vmatprep.mubr.f32.mxu0 0.0
    %2036 = vmatmul.mubr.f32.gmra.mxu0 %v1820
    %v2037 = vpop.f32.mrf.mxu0
    %v2038 = vadd.f32 %v1810, %v2037
    %v2039 = vpop.f32.mrf.mxu0
    %2040 = vmatprep.mubr.f32.mxu0 0.0
    %2041 = vmatmul.mubr.f32.gmra.mxu0 %v1823
    %v2042 = vpop.f32.mrf.mxu0
    %v2043 = vadd.f32 %v1810, %v2042
    %v2044 = vpop.f32.mrf.mxu0
    %2045 = vmatprep.mubr.f32.mxu0 0.0
    %2046 = vmatmul.mubr.f32.gmra.mxu0 %v1826
    %v2047 = vpop.f32.mrf.mxu0
    %v2048 = vadd.f32 %v1810, %v2047
    %v2049 = vpop.f32.mrf.mxu0
    %2050 = vmatprep.mubr.f32.mxu0 0.0
    %2051 = vmatmul.mubr.f32.gmra.mxu0 %v1829
    %v2052 = vpop.f32.mrf.mxu0
    %v2053 = vadd.f32 %v1810, %v2052
    %v2054 = vpop.f32.mrf.mxu0
    %2055 = vmatprep.mubr.f32.mxu0 0.0
    %2056 = vmatmul.mubr.f32.gmra.mxu0 %v1832
    %v2057 = vpop.f32.mrf.mxu0
    %v2058 = vadd.f32 %v1810, %v2057
    %v2059 = vpop.f32.mrf.mxu0
    %2060 = vmatprep.mubr.f32.mxu0 0.0
    %2061 = vmatmul.mubr.f32.gmra.mxu0 %v1835
    %v2062 = vpop.f32.mrf.mxu0
    %v2063 = vadd.f32 %v1810, %v2062
    %v2064 = vpop.f32.mrf.mxu0
    %2065 = vmatprep.mubr.f32.mxu0 0.0
    %2066 = vmatmul.mubr.f32.gmra.mxu0 %v1838
    %v2067 = vpop.f32.mrf.mxu0
    %v2068 = vadd.f32 %v1810, %v2067
    %v2069 = vpop.f32.mrf.mxu0
    %2070 = vmatprep.mubr.f32.mxu0 0.0
    %2071 = vmatmul.mubr.f32.gmra.mxu0 %v1841
    %v2072 = vpop.f32.mrf.mxu0
    %v2073 = vadd.f32 %v1810, %v2072
    %v2074 = vpop.f32.mrf.mxu0
    %2075 = vmatprep.mubr.f32.mxu0 0.0
    %2076 = vmatmul.mubr.f32.gmra.mxu0 %v1844
    %v2077 = vpop.f32.mrf.mxu0
    %v2078 = vadd.f32 %v1810, %v2077
    %v2079 = vpop.f32.mrf.mxu0
    %2080 = vmatprep.mubr.f32.mxu0 0.0
    %2081 = vmatmul.mubr.f32.gmra.mxu0 %v1847
    %v2082 = vpop.f32.mrf.mxu0
    %v2083 = vadd.f32 %v1810, %v2082
    %v2084 = vpop.f32.mrf.mxu0
    %2085 = vmatprep.mubr.f32.mxu0 0.0
    %2086 = vmatmul.mubr.f32.gmra.mxu0 %v1850
    %v2087 = vpop.f32.mrf.mxu0
    %v2088 = vadd.f32 %v1810, %v2087
    %v2089 = vpop.f32.mrf.mxu0
    %2090 = vmatprep.mubr.f32.mxu0 0.0
    %2091 = vmatmul.mubr.f32.gmra.mxu0 %v1853
    %v2092 = vpop.f32.mrf.mxu0
    %v2093 = vadd.f32 %v1810, %v2092
    %v2094 = vpop.f32.mrf.mxu0
    %2095 = vmatprep.mubr.f32.mxu0 0.0
    %2096 = vmatmul.mubr.f32.gmra.mxu0 %v1856
    %v2097 = vpop.f32.mrf.mxu0
    %v2098 = vadd.f32 %v1810, %v2097
    %v2099 = vpop.f32.mrf.mxu0
    %2100 = vmatprep.mubr.f32.mxu0 0.0
    %2101 = vmatmul.mubr.f32.gmra.mxu0 %v1859
    %v2102 = vpop.f32.mrf.mxu0
    %v2103 = vadd.f32 %v1810, %v2102
    %v2104 = vpop.f32.mrf.mxu0
    %2105 = vmatprep.mubr.f32.mxu0 0.0
    %2106 = vmatmul.mubr.f32.gmra.mxu0 %v1862
    %v2107 = vpop.f32.mrf.mxu0
    %v2108 = vadd.f32 %v1810, %v2107
    %v2109 = vpop.f32.mrf.mxu0
    %2110 = vmatprep.mubr.f32.mxu0 0.0
    %2111 = vmatmul.mubr.f32.gmra.mxu0 %v1865
    %v2112 = vpop.f32.mrf.mxu0
    %v2113 = vadd.f32 %v1810, %v2112
    %v2114 = vpop.f32.mrf.mxu0
    %2115 = vmatprep.mubr.f32.mxu0 0.0
    %2116 = vmatmul.mubr.f32.gmra.mxu0 %v1868
    %v2117 = vpop.f32.mrf.mxu0
    %v2118 = vadd.f32 %v1810, %v2117
    %v2119 = vpop.f32.mrf.mxu0
    %2120 = vmatprep.mubr.f32.mxu0 0.0
    %2121 = vmatmul.mubr.f32.gmra.mxu0 %v1871
    %v2122 = vpop.f32.mrf.mxu0
    %v2123 = vadd.f32 %v1810, %v2122
    %v2124 = vpop.f32.mrf.mxu0
    %2125 = vmatprep.mubr.f32.mxu0 0.0
    %2126 = vmatmul.mubr.f32.gmra.mxu0 %v1874
    %v2127 = vpop.f32.mrf.mxu0
    %v2128 = vadd.f32 %v1810, %v2127
    %v2129 = vpop.f32.mrf.mxu0
    %2130 = vmatprep.mubr.f32.mxu0 0.0
    %2131 = vmatmul.mubr.f32.gmra.mxu0 %v1877
    %v2132 = vpop.f32.mrf.mxu0
    %v2133 = vadd.f32 %v1810, %v2132
    %v2134 = vpop.f32.mrf.mxu0
    %2135 = vmatprep.mubr.f32.mxu0 0.0
    %2136 = vmatmul.mubr.f32.gmra.mxu0 %v1880
    %v2137 = vpop.f32.mrf.mxu0
    %v2138 = vadd.f32 %v1810, %v2137
    %v2139 = vpop.f32.mrf.mxu0
    %2140 = vmatprep.mubr.f32.mxu0 0.0
    %2141 = vmatmul.mubr.f32.gmra.mxu0 %v1883
    %v2142 = vpop.f32.mrf.mxu0
    %v2143 = vadd.f32 %v1810, %v2142
    %v2144 = vpop.f32.mrf.mxu0
    %2145 = vmatprep.mubr.f32.mxu0 0.0
    %2146 = vmatmul.mubr.f32.gmra.mxu0 %v1886
    %v2147 = vpop.f32.mrf.mxu0
    %v2148 = vadd.f32 %v1810, %v2147
    %v2149 = vpop.f32.mrf.mxu0
    %2150 = vmatprep.mubr.f32.mxu0 0.0
    %2151 = vmatmul.mubr.f32.gmra.mxu0 %v1889
    %v2152 = vpop.f32.mrf.mxu0
    %v2153 = vadd.f32 %v1810, %v2152
    %v2154 = vpop.f32.mrf.mxu0
    %2155 = vmatprep.mubr.f32.mxu0 0.0
    %2156 = vmatmul.mubr.f32.gmra.mxu0 %v1892
    %v2157 = vpop.f32.mrf.mxu0
    %v2158 = vadd.f32 %v1810, %v2157
    %v2159 = vpop.f32.mrf.mxu0
    %2160 = vmatprep.mubr.f32.mxu0 0.0
    %2161 = vmatmul.mubr.f32.gmra.mxu0 %v1895
    %v2162 = vpop.f32.mrf.mxu0
    %v2163 = vadd.f32 %v1810, %v2162
    %v2164 = vpop.f32.mrf.mxu0
    %2165 = vmatprep.mubr.f32.mxu0 0.0
    %2166 = vmatmul.mubr.f32.gmra.mxu0 %v1898
    %v2167 = vpop.f32.mrf.mxu0
    %v2168 = vadd.f32 %v1810, %v2167
    %v2169 = vpop.f32.mrf.mxu0
    %2170 = vmatprep.mubr.f32.mxu0 0.0
    %2171 = vmatmul.mubr.f32.gmra.mxu0 %v1901
    %v2172 = vpop.f32.mrf.mxu0
    %v2173 = vadd.f32 %v1810, %v2172
    %v2174 = vpop.f32.mrf.mxu0
    %2175 = vmatprep.mubr.f32.mxu0 0.0
    %2176 = vmatmul.mubr.f32.gmra.mxu0 %v1904
    %v2177 = vpop.f32.mrf.mxu0
    %v2178 = vadd.f32 %v1810, %v2177
    %v2179 = vpop.f32.mrf.mxu0
    %2180 = vmatprep.mubr.f32.mxu0 0.0
    %2181 = vmatmul.mubr.f32.gmra.mxu0 %v1907
    %v2182 = vpop.f32.mrf.mxu0
    %v2183 = vadd.f32 %v1810, %v2182
    %v2184 = vpop.f32.mrf.mxu0
    %2185 = vmatprep.mubr.f32.mxu0 0.0
    %2186 = vmatmul.mubr.f32.gmra.mxu0 %v1910
    %v2187 = vpop.f32.mrf.mxu0
    %v2188 = vadd.f32 %v1810, %v2187
    %v2189 = vpop.f32.mrf.mxu0
    %2190 = vmatprep.mubr.f32.mxu0 0.0
    %2191 = vmatmul.mubr.f32.gmra.mxu0 %v1913
    %v2192 = vpop.f32.mrf.mxu0
    %v2193 = vadd.f32 %v1810, %v2192
    %v2194 = vpop.f32.mrf.mxu0
    %2195 = vmatprep.mubr.f32.mxu0 0.0
    %2196 = vmatmul.mubr.f32.gmra.mxu0 %v1916
    %v2197 = vpop.f32.mrf.mxu0
    %v2198 = vadd.f32 %v1810, %v2197
    %v2199 = vpop.f32.mrf.mxu0
    %2200 = vmatprep.mubr.f32.mxu0 0.0
    %2201 = vmatmul.mubr.f32.gmra.mxu0 %v1919
    %v2202 = vpop.f32.mrf.mxu0
    %v2203 = vadd.f32 %v1810, %v2202
    %v2204 = vpop.f32.mrf.mxu0
    %2205 = vmatprep.mubr.f32.mxu0 0.0
    %2206 = vmatmul.mubr.f32.gmra.mxu0 %v1922
    %v2207 = vpop.f32.mrf.mxu0
    %v2208 = vadd.f32 %v1810, %v2207
    %v2209 = vpop.f32.mrf.mxu0
    %2210 = vmatprep.mubr.f32.mxu0 0.0
    %2211 = vmatmul.mubr.f32.gmra.mxu0 %v1925
    %v2212 = vpop.f32.mrf.mxu0
    %v2213 = vadd.f32 %v1810, %v2212
    %v2214 = vpop.f32.mrf.mxu0
    %2215 = vmatprep.mubr.f32.mxu0 0.0
    %2216 = vmatmul.mubr.f32.gmra.mxu0 %v1928
    %v2217 = vpop.f32.mrf.mxu0
    %v2218 = vadd.f32 %v1810, %v2217
    %v2219 = vpop.f32.mrf.mxu0
    %2220 = vmatprep.mubr.f32.mxu0 0.0
    %2221 = vmatmul.mubr.f32.gmra.mxu0 %v1931
    %v2222 = vpop.f32.mrf.mxu0
    %v2223 = vadd.f32 %v1810, %v2222
    %v2224 = vpop.f32.mrf.mxu0
    %2225 = vmatprep.mubr.f32.mxu0 0.0
    %2226 = vmatmul.mubr.f32.gmra.mxu0 %v1934
    %v2227 = vpop.f32.mrf.mxu0
    %v2228 = vadd.f32 %v1810, %v2227
    %v2229 = vpop.f32.mrf.mxu0
    %2230 = vmatprep.mubr.f32.mxu0 0.0
    %2231 = vmatmul.mubr.f32.gmra.mxu0 %v1937
    %v2232 = vpop.f32.mrf.mxu0
    %v2233 = vadd.f32 %v1810, %v2232
    %v2234 = vpop.f32.mrf.mxu0
    %2235 = vmatprep.mubr.f32.mxu0 0.0
    %2236 = vmatmul.mubr.f32.gmra.mxu0 %v1940
    %v2237 = vpop.f32.mrf.mxu0
    %v2238 = vadd.f32 %v1810, %v2237
    %v2239 = vpop.f32.mrf.mxu0
    %2240 = vmatprep.mubr.f32.mxu0 0.0
    %2241 = vmatmul.mubr.f32.gmra.mxu0 %v1943
    %v2242 = vpop.f32.mrf.mxu0
    %v2243 = vadd.f32 %v1810, %v2242
    %v2244 = vpop.f32.mrf.mxu0
    %2245 = vmatprep.mubr.f32.mxu0 0.0
    %2246 = vmatmul.mubr.f32.gmra.mxu0 %v1946
    %v2247 = vpop.f32.mrf.mxu0
    %v2248 = vadd.f32 %v1810, %v2247
    %v2249 = vpop.f32.mrf.mxu0
    %2250 = vmatprep.mubr.f32.mxu0 0.0
    %2251 = vmatmul.mubr.f32.gmra.mxu0 %v1949
    %v2252 = vpop.f32.mrf.mxu0
    %v2253 = vadd.f32 %v1810, %v2252
    %v2254 = vpop.f32.mrf.mxu0
    %2255 = vmatprep.mubr.f32.mxu0 0.0
    %2256 = vmatmul.mubr.f32.gmra.mxu0 %v1952
    %v2257 = vpop.f32.mrf.mxu0
    %v2258 = vadd.f32 %v1810, %v2257
    %v2259 = vpop.f32.mrf.mxu0
    %2260 = vmatprep.mubr.f32.mxu0 0.0
    %2261 = vmatmul.mubr.f32.gmra.mxu0 %v1955
    %v2262 = vpop.f32.mrf.mxu0
    %v2263 = vadd.f32 %v1810, %v2262
    %v2264 = vpop.f32.mrf.mxu0
    %2265 = vdwg.mxu0
    %v2266 = vld [vmem:[%s3] sm:$0xff]
    %v2267 = vld [vmem:[%s3 + $0x8] sm:$0xff]
    %v2268 = vld [vmem:[%s3 + $0x10] sm:$0xff]
    %v2269 = vld [vmem:[%s3 + $0x18] sm:$0xff]
    %v2270 = vld [vmem:[%s3 + $0x20] sm:$0xff]
    %v2271 = vld [vmem:[%s3 + $0x28] sm:$0xff]
    %v2272 = vld [vmem:[%s3 + $0x30] sm:$0xff]
    %v2273 = vld [vmem:[%s3 + $0x38] sm:$0xff]
    %v2274 = vld [vmem:[%s3 + $0x40] sm:$0xff]
    %v2275 = vld [vmem:[%s3 + $0x48] sm:$0xff]
    %v2276 = vld [vmem:[%s3 + $0x50] sm:$0xff]
    %v2277 = vld [vmem:[%s3 + $0x58] sm:$0xff]
    %v2278 = vld [vmem:[%s3 + $0x60] sm:$0xff]
    %v2279 = vld [vmem:[%s3 + $0x68] sm:$0xff]
    %v2280 = vld [vmem:[%s3 + $0x70] sm:$0xff]
    %v2281 = vld [vmem:[%s3 + $0x78] sm:$0xff]
    %v2282 = vld [vmem:[%s3 + $0x80] sm:$0xff]
    %v2283 = vld [vmem:[%s3 + $0x88] sm:$0xff]
    %v2284 = vld [vmem:[%s3 + $0x90] sm:$0xff]
    %v2285 = vld [vmem:[%s3 + $0x98] sm:$0xff]
    %v2286 = vld [vmem:[%s3 + $0xa0] sm:$0xff]
    %v2287 = vld [vmem:[%s3 + $0xa8] sm:$0xff]
    %v2288 = vld [vmem:[%s3 + $0xb0] sm:$0xff]
    %v2289 = vld [vmem:[%s3 + $0xb8] sm:$0xff]
    %v2290 = vld [vmem:[%s3 + $0xc0] sm:$0xff]
    %v2291 = vld [vmem:[%s3 + $0xc8] sm:$0xff]
    %v2292 = vld [vmem:[%s3 + $0xd0] sm:$0xff]
    %v2293 = vld [vmem:[%s3 + $0xd8] sm:$0xff]
    %v2294 = vld [vmem:[%s3 + $0xe0] sm:$0xff]
    %v2295 = vld [vmem:[%s3 + $0xe8] sm:$0xff]
    %v2296 = vld [vmem:[%s3 + $0xf0] sm:$0xff]
    %v2297 = vld [vmem:[%s3 + $0xf8] sm:$0xff]
    %v2298 = vld [vmem:[%s3 + $0x100] sm:$0xff]
    %v2299 = vld [vmem:[%s3 + $0x108] sm:$0xff]
    %v2300 = vld [vmem:[%s3 + $0x110] sm:$0xff]
    %v2301 = vld [vmem:[%s3 + $0x118] sm:$0xff]
    %v2302 = vld [vmem:[%s3 + $0x120] sm:$0xff]
    %v2303 = vld [vmem:[%s3 + $0x128] sm:$0xff]
    %v2304 = vld [vmem:[%s3 + $0x130] sm:$0xff]
    %v2305 = vld [vmem:[%s3 + $0x138] sm:$0xff]
    %v2306 = vld [vmem:[%s3 + $0x140] sm:$0xff]
    %v2307 = vld [vmem:[%s3 + $0x148] sm:$0xff]
    %v2308 = vld [vmem:[%s3 + $0x150] sm:$0xff]
    %v2309 = vld [vmem:[%s3 + $0x158] sm:$0xff]
    %v2310 = vld [vmem:[%s3 + $0x160] sm:$0xff]
    %v2311 = vld [vmem:[%s3 + $0x168] sm:$0xff]
    %v2312 = vld [vmem:[%s3 + $0x170] sm:$0xff]
    %v2313 = vld [vmem:[%s3 + $0x178] sm:$0xff]
    %v2314 = vld [vmem:[%s4] sm:$0xff]
    %v2315 = vld [vmem:[%s4 + $0x8] sm:$0xff]
    %v2316 = vld [vmem:[%s4 + $0x10] sm:$0xff]
    %v2317 = vld [vmem:[%s4 + $0x18] sm:$0xff]
    %v2318 = vld [vmem:[%s4 + $0x20] sm:$0xff]
    %v2319 = vld [vmem:[%s4 + $0x28] sm:$0xff]
    %v2320 = vld [vmem:[%s4 + $0x30] sm:$0xff]
    %v2321 = vld [vmem:[%s4 + $0x38] sm:$0xff]
    %v2322 = vld [vmem:[%s4 + $0x40] sm:$0xff]
    %v2323 = vld [vmem:[%s4 + $0x48] sm:$0xff]
    %v2324 = vld [vmem:[%s4 + $0x50] sm:$0xff]
    %v2325 = vld [vmem:[%s4 + $0x58] sm:$0xff]
    %v2326 = vld [vmem:[%s4 + $0x60] sm:$0xff]
    %v2327 = vld [vmem:[%s4 + $0x68] sm:$0xff]
    %v2328 = vld [vmem:[%s4 + $0x70] sm:$0xff]
    %v2329 = vld [vmem:[%s4 + $0x78] sm:$0xff]
    %v2330 = vld [vmem:[%s4 + $0x80] sm:$0xff]
    %v2331 = vld [vmem:[%s4 + $0x88] sm:$0xff]
    %v2332 = vld [vmem:[%s4 + $0x90] sm:$0xff]
    %v2333 = vld [vmem:[%s4 + $0x98] sm:$0xff]
    %v2334 = vld [vmem:[%s4 + $0xa0] sm:$0xff]
    %v2335 = vld [vmem:[%s4 + $0xa8] sm:$0xff]
    %v2336 = vld [vmem:[%s4 + $0xb0] sm:$0xff]
    %v2337 = vld [vmem:[%s4 + $0xb8] sm:$0xff]
    %v2338 = vld [vmem:[%s4 + $0xc0] sm:$0xff]
    %v2339 = vld [vmem:[%s4 + $0xc8] sm:$0xff]
    %v2340 = vld [vmem:[%s4 + $0xd0] sm:$0xff]
    %v2341 = vld [vmem:[%s4 + $0xd8] sm:$0xff]
    %v2342 = vld [vmem:[%s4 + $0xe0] sm:$0xff]
    %v2343 = vld [vmem:[%s4 + $0xe8] sm:$0xff]
    %v2344 = vld [vmem:[%s4 + $0xf0] sm:$0xff]
    %v2345 = vld [vmem:[%s4 + $0xf8] sm:$0xff]
    %v2346 = vld [vmem:[%s4 + $0x100] sm:$0xff]
    %v2347 = vld [vmem:[%s4 + $0x108] sm:$0xff]
    %v2348 = vld [vmem:[%s4 + $0x110] sm:$0xff]
    %v2349 = vld [vmem:[%s4 + $0x118] sm:$0xff]
    %v2350 = vld [vmem:[%s4 + $0x120] sm:$0xff]
    %v2351 = vld [vmem:[%s4 + $0x128] sm:$0xff]
    %v2352 = vld [vmem:[%s4 + $0x130] sm:$0xff]
    %v2353 = vld [vmem:[%s4 + $0x138] sm:$0xff]
    %v2354 = vld [vmem:[%s4 + $0x140] sm:$0xff]
    %v2355 = vld [vmem:[%s4 + $0x148] sm:$0xff]
    %v2356 = vld [vmem:[%s4 + $0x150] sm:$0xff]
    %v2357 = vld [vmem:[%s4 + $0x158] sm:$0xff]
    %v2358 = vld [vmem:[%s4 + $0x160] sm:$0xff]
    %v2359 = vld [vmem:[%s4 + $0x168] sm:$0xff]
    %v2360 = vld [vmem:[%s4 + $0x170] sm:$0xff]
    %v2361 = vld [vmem:[%s4 + $0x178] sm:$0xff]
    %2410 = vrot.lane.b32.xlu0 %v2266, 32
    %v2411 = vpop.permute.xlu0 %2410
    %2412 = vrot.lane.b32.xlu0 %v2267, 32
    %v2413 = vpop.permute.xlu0 %2412
    %2414 = vrot.lane.b32.xlu0 %v2268, 32
    %v2415 = vpop.permute.xlu0 %2414
    %2416 = vrot.lane.b32.xlu0 %v2269, 32
    %v2417 = vpop.permute.xlu0 %2416
    %2418 = vrot.lane.b32.xlu0 %v2270, 32
    %v2419 = vpop.permute.xlu0 %2418
    %2420 = vrot.lane.b32.xlu0 %v2271, 32
    %v2421 = vpop.permute.xlu0 %2420
    %2422 = vrot.lane.b32.xlu0 %v2272, 32
    %v2423 = vpop.permute.xlu0 %2422
    %2424 = vrot.lane.b32.xlu0 %v2273, 32
    %v2425 = vpop.permute.xlu0 %2424
    %2426 = vrot.lane.b32.xlu0 %v2274, 32
    %v2427 = vpop.permute.xlu0 %2426
    %2428 = vrot.lane.b32.xlu0 %v2275, 32
    %v2429 = vpop.permute.xlu0 %2428
    %2430 = vrot.lane.b32.xlu0 %v2276, 32
    %v2431 = vpop.permute.xlu0 %2430
    %2432 = vrot.lane.b32.xlu0 %v2277, 32
    %v2433 = vpop.permute.xlu0 %2432
    %2434 = vrot.lane.b32.xlu0 %v2278, 32
    %v2435 = vpop.permute.xlu0 %2434
    %2436 = vrot.lane.b32.xlu0 %v2279, 32
    %v2437 = vpop.permute.xlu0 %2436
    %2438 = vrot.lane.b32.xlu0 %v2280, 32
    %v2439 = vpop.permute.xlu0 %2438
    %2440 = vrot.lane.b32.xlu0 %v2281, 32
    %v2441 = vpop.permute.xlu0 %2440
    %2442 = vrot.lane.b32.xlu0 %v2282, 32
    %v2443 = vpop.permute.xlu0 %2442
    %2444 = vrot.lane.b32.xlu0 %v2283, 32
    %v2445 = vpop.permute.xlu0 %2444
    %2446 = vrot.lane.b32.xlu0 %v2284, 32
    %v2447 = vpop.permute.xlu0 %2446
    %2448 = vrot.lane.b32.xlu0 %v2285, 32
    %v2449 = vpop.permute.xlu0 %2448
    %2450 = vrot.lane.b32.xlu0 %v2286, 32
    %v2451 = vpop.permute.xlu0 %2450
    %2452 = vrot.lane.b32.xlu0 %v2287, 32
    %v2453 = vpop.permute.xlu0 %2452
    %2454 = vrot.lane.b32.xlu0 %v2288, 32
    %v2455 = vpop.permute.xlu0 %2454
    %2456 = vrot.lane.b32.xlu0 %v2289, 32
    %v2457 = vpop.permute.xlu0 %2456
    %2458 = vrot.lane.b32.xlu0 %v2290, 32
    %v2459 = vpop.permute.xlu0 %2458
    %2460 = vrot.lane.b32.xlu0 %v2291, 32
    %v2461 = vpop.permute.xlu0 %2460
    %2462 = vrot.lane.b32.xlu0 %v2292, 32
    %v2463 = vpop.permute.xlu0 %2462
    %2464 = vrot.lane.b32.xlu0 %v2293, 32
    %v2465 = vpop.permute.xlu0 %2464
    %2466 = vrot.lane.b32.xlu0 %v2294, 32
    %v2467 = vpop.permute.xlu0 %2466
    %2468 = vrot.lane.b32.xlu0 %v2295, 32
    %v2469 = vpop.permute.xlu0 %2468
    %2470 = vrot.lane.b32.xlu0 %v2296, 32
    %v2471 = vpop.permute.xlu0 %2470
    %2472 = vrot.lane.b32.xlu0 %v2297, 32
    %v2473 = vpop.permute.xlu0 %2472
    %2474 = vrot.lane.b32.xlu0 %v2298, 32
    %v2475 = vpop.permute.xlu0 %2474
    %2476 = vrot.lane.b32.xlu0 %v2299, 32
    %v2477 = vpop.permute.xlu0 %2476
    %2478 = vrot.lane.b32.xlu0 %v2300, 32
    %v2479 = vpop.permute.xlu0 %2478
    %2480 = vrot.lane.b32.xlu0 %v2301, 32
    %v2481 = vpop.permute.xlu0 %2480
    %2482 = vrot.lane.b32.xlu0 %v2302, 32
    %v2483 = vpop.permute.xlu0 %2482
    %2484 = vrot.lane.b32.xlu0 %v2303, 32
    %v2485 = vpop.permute.xlu0 %2484
    %2486 = vrot.lane.b32.xlu0 %v2304, 32
    %v2487 = vpop.permute.xlu0 %2486
    %2488 = vrot.lane.b32.xlu0 %v2305, 32
    %v2489 = vpop.permute.xlu0 %2488
    %2490 = vrot.lane.b32.xlu0 %v2306, 32
    %v2491 = vpop.permute.xlu0 %2490
    %2492 = vrot.lane.b32.xlu0 %v2307, 32
    %v2493 = vpop.permute.xlu0 %2492
    %2494 = vrot.lane.b32.xlu0 %v2308, 32
    %v2495 = vpop.permute.xlu0 %2494
    %2496 = vrot.lane.b32.xlu0 %v2309, 32
    %v2497 = vpop.permute.xlu0 %2496
    %2498 = vrot.lane.b32.xlu0 %v2310, 32
    %v2499 = vpop.permute.xlu0 %2498
    %2500 = vrot.lane.b32.xlu0 %v2311, 32
    %v2501 = vpop.permute.xlu0 %2500
    %2502 = vrot.lane.b32.xlu0 %v2312, 32
    %v2503 = vpop.permute.xlu0 %2502
    %2504 = vrot.lane.b32.xlu0 %v2313, 32
    %v2505 = vpop.permute.xlu0 %2504
    %2602 = vrot.lane.b32.xlu0 %v2314, 40
    %v2603 = vpop.permute.xlu0 %2602
    %2604 = vrot.lane.b32.xlu0 %v2315, 40
    %v2605 = vpop.permute.xlu0 %2604
    %2606 = vrot.lane.b32.xlu0 %v2316, 40
    %v2607 = vpop.permute.xlu0 %2606
    %2608 = vrot.lane.b32.xlu0 %v2317, 40
    %v2609 = vpop.permute.xlu0 %2608
    %2610 = vrot.lane.b32.xlu0 %v2318, 40
    %v2611 = vpop.permute.xlu0 %2610
    %2612 = vrot.lane.b32.xlu0 %v2319, 40
    %v2613 = vpop.permute.xlu0 %2612
    %2614 = vrot.lane.b32.xlu0 %v2320, 40
    %v2615 = vpop.permute.xlu0 %2614
    %2616 = vrot.lane.b32.xlu0 %v2321, 40
    %v2617 = vpop.permute.xlu0 %2616
    %2618 = vrot.lane.b32.xlu0 %v2322, 40
    %v2619 = vpop.permute.xlu0 %2618
    %2620 = vrot.lane.b32.xlu0 %v2323, 40
    %v2621 = vpop.permute.xlu0 %2620
    %2622 = vrot.lane.b32.xlu0 %v2324, 40
    %v2623 = vpop.permute.xlu0 %2622
    %2624 = vrot.lane.b32.xlu0 %v2325, 40
    %v2625 = vpop.permute.xlu0 %2624
    %2626 = vrot.lane.b32.xlu0 %v2326, 40
    %v2627 = vpop.permute.xlu0 %2626
    %2628 = vrot.lane.b32.xlu0 %v2327, 40
    %v2629 = vpop.permute.xlu0 %2628
    %2630 = vrot.lane.b32.xlu0 %v2328, 40
    %v2631 = vpop.permute.xlu0 %2630
    %2632 = vrot.lane.b32.xlu0 %v2329, 40
    %v2633 = vpop.permute.xlu0 %2632
    %2634 = vrot.lane.b32.xlu0 %v2330, 40
    %v2635 = vpop.permute.xlu0 %2634
    %2636 = vrot.lane.b32.xlu0 %v2331, 40
    %v2637 = vpop.permute.xlu0 %2636
    %2638 = vrot.lane.b32.xlu0 %v2332, 40
    %v2639 = vpop.permute.xlu0 %2638
    %2640 = vrot.lane.b32.xlu0 %v2333, 40
    %v2641 = vpop.permute.xlu0 %2640
    %2642 = vrot.lane.b32.xlu0 %v2334, 40
    %v2643 = vpop.permute.xlu0 %2642
    %2644 = vrot.lane.b32.xlu0 %v2335, 40
    %v2645 = vpop.permute.xlu0 %2644
    %2646 = vrot.lane.b32.xlu0 %v2336, 40
    %v2647 = vpop.permute.xlu0 %2646
    %2648 = vrot.lane.b32.xlu0 %v2337, 40
    %v2649 = vpop.permute.xlu0 %2648
    %2650 = vrot.lane.b32.xlu0 %v2338, 40
    %v2651 = vpop.permute.xlu0 %2650
    %2652 = vrot.lane.b32.xlu0 %v2339, 40
    %v2653 = vpop.permute.xlu0 %2652
    %2654 = vrot.lane.b32.xlu0 %v2340, 40
    %v2655 = vpop.permute.xlu0 %2654
    %2656 = vrot.lane.b32.xlu0 %v2341, 40
    %v2657 = vpop.permute.xlu0 %2656
    %2658 = vrot.lane.b32.xlu0 %v2342, 40
    %v2659 = vpop.permute.xlu0 %2658
    %2660 = vrot.lane.b32.xlu0 %v2343, 40
    %v2661 = vpop.permute.xlu0 %2660
    %2662 = vrot.lane.b32.xlu0 %v2344, 40
    %v2663 = vpop.permute.xlu0 %2662
    %2664 = vrot.lane.b32.xlu0 %v2345, 40
    %v2665 = vpop.permute.xlu0 %2664
    %2666 = vrot.lane.b32.xlu0 %v2346, 40
    %v2667 = vpop.permute.xlu0 %2666
    %2668 = vrot.lane.b32.xlu0 %v2347, 40
    %v2669 = vpop.permute.xlu0 %2668
    %2670 = vrot.lane.b32.xlu0 %v2348, 40
    %v2671 = vpop.permute.xlu0 %2670
    %2672 = vrot.lane.b32.xlu0 %v2349, 40
    %v2673 = vpop.permute.xlu0 %2672
    %2674 = vrot.lane.b32.xlu0 %v2350, 40
    %v2675 = vpop.permute.xlu0 %2674
    %2676 = vrot.lane.b32.xlu0 %v2351, 40
    %v2677 = vpop.permute.xlu0 %2676
    %2678 = vrot.lane.b32.xlu0 %v2352, 40
    %v2679 = vpop.permute.xlu0 %2678
    %2680 = vrot.lane.b32.xlu0 %v2353, 40
    %v2681 = vpop.permute.xlu0 %2680
    %2682 = vrot.lane.b32.xlu0 %v2354, 40
    %v2683 = vpop.permute.xlu0 %2682
    %2684 = vrot.lane.b32.xlu0 %v2355, 40
    %v2685 = vpop.permute.xlu0 %2684
    %2686 = vrot.lane.b32.xlu0 %v2356, 40
    %v2687 = vpop.permute.xlu0 %2686
    %2688 = vrot.lane.b32.xlu0 %v2357, 40
    %v2689 = vpop.permute.xlu0 %2688
    %2690 = vrot.lane.b32.xlu0 %v2358, 40
    %v2691 = vpop.permute.xlu0 %2690
    %2692 = vrot.lane.b32.xlu0 %v2359, 40
    %v2693 = vpop.permute.xlu0 %2692
    %2694 = vrot.lane.b32.xlu0 %v2360, 40
    %v2695 = vpop.permute.xlu0 %2694
    %2696 = vrot.lane.b32.xlu0 %v2361, 40
    %v2697 = vpop.permute.xlu0 %2696
    %vm2746 = vcmask 261120
    %v2747 = vsel %vm2746, %v2028, %v2411
    %v2748 = vsel %vm2746, %v2033, %v2413
    %v2749 = vsel %vm2746, %v2038, %v2415
    %v2750 = vsel %vm2746, %v2043, %v2417
    %v2751 = vsel %vm2746, %v2048, %v2419
    %v2752 = vsel %vm2746, %v2053, %v2421
    %v2753 = vsel %vm2746, %v2058, %v2423
    %v2754 = vsel %vm2746, %v2063, %v2425
    %v2755 = vsel %vm2746, %v2068, %v2427
    %v2756 = vsel %vm2746, %v2073, %v2429
    %v2757 = vsel %vm2746, %v2078, %v2431
    %v2758 = vsel %vm2746, %v2083, %v2433
    %v2759 = vsel %vm2746, %v2088, %v2435
    %v2760 = vsel %vm2746, %v2093, %v2437
    %v2761 = vsel %vm2746, %v2098, %v2439
    %v2762 = vsel %vm2746, %v2103, %v2441
    %v2763 = vsel %vm2746, %v2108, %v2443
    %v2764 = vsel %vm2746, %v2113, %v2445
    %v2765 = vsel %vm2746, %v2118, %v2447
    %v2766 = vsel %vm2746, %v2123, %v2449
    %v2767 = vsel %vm2746, %v2128, %v2451
    %v2768 = vsel %vm2746, %v2133, %v2453
    %v2769 = vsel %vm2746, %v2138, %v2455
    %v2770 = vsel %vm2746, %v2143, %v2457
    %v2771 = vsel %vm2746, %v2148, %v2459
    %v2772 = vsel %vm2746, %v2153, %v2461
    %v2773 = vsel %vm2746, %v2158, %v2463
    %v2774 = vsel %vm2746, %v2163, %v2465
    %v2775 = vsel %vm2746, %v2168, %v2467
    %v2776 = vsel %vm2746, %v2173, %v2469
    %v2777 = vsel %vm2746, %v2178, %v2471
    %v2778 = vsel %vm2746, %v2183, %v2473
    %v2779 = vsel %vm2746, %v2188, %v2475
    %v2780 = vsel %vm2746, %v2193, %v2477
    %v2781 = vsel %vm2746, %v2198, %v2479
    %v2782 = vsel %vm2746, %v2203, %v2481
    %v2783 = vsel %vm2746, %v2208, %v2483
    %v2784 = vsel %vm2746, %v2213, %v2485
    %v2785 = vsel %vm2746, %v2218, %v2487
    %v2786 = vsel %vm2746, %v2223, %v2489
    %v2787 = vsel %vm2746, %v2228, %v2491
    %v2788 = vsel %vm2746, %v2233, %v2493
    %v2789 = vsel %vm2746, %v2238, %v2495
    %v2790 = vsel %vm2746, %v2243, %v2497
    %v2791 = vsel %vm2746, %v2248, %v2499
    %v2792 = vsel %vm2746, %v2253, %v2501
    %v2793 = vsel %vm2746, %v2258, %v2503
    %v2794 = vsel %vm2746, %v2263, %v2505
    %vm2795 = vcmask 326656
    %v2796 = vsel %vm2795, %v2747, %v2603
    %v2797 = vsel %vm2795, %v2748, %v2605
    %v2798 = vsel %vm2795, %v2749, %v2607
    %v2799 = vsel %vm2795, %v2750, %v2609
    %v2800 = vsel %vm2795, %v2751, %v2611
    %v2801 = vsel %vm2795, %v2752, %v2613
    %v2802 = vsel %vm2795, %v2753, %v2615
    %v2803 = vsel %vm2795, %v2754, %v2617
    %v2804 = vsel %vm2795, %v2755, %v2619
    %v2805 = vsel %vm2795, %v2756, %v2621
    %v2806 = vsel %vm2795, %v2757, %v2623
    %v2807 = vsel %vm2795, %v2758, %v2625
    %v2808 = vsel %vm2795, %v2759, %v2627
    %v2809 = vsel %vm2795, %v2760, %v2629
    %v2810 = vsel %vm2795, %v2761, %v2631
    %v2811 = vsel %vm2795, %v2762, %v2633
    %v2812 = vsel %vm2795, %v2763, %v2635
    %v2813 = vsel %vm2795, %v2764, %v2637
    %v2814 = vsel %vm2795, %v2765, %v2639
    %v2815 = vsel %vm2795, %v2766, %v2641
    %v2816 = vsel %vm2795, %v2767, %v2643
    %v2817 = vsel %vm2795, %v2768, %v2645
    %v2818 = vsel %vm2795, %v2769, %v2647
    %v2819 = vsel %vm2795, %v2770, %v2649
    %v2820 = vsel %vm2795, %v2771, %v2651
    %v2821 = vsel %vm2795, %v2772, %v2653
    %v2822 = vsel %vm2795, %v2773, %v2655
    %v2823 = vsel %vm2795, %v2774, %v2657
    %v2824 = vsel %vm2795, %v2775, %v2659
    %v2825 = vsel %vm2795, %v2776, %v2661
    %v2826 = vsel %vm2795, %v2777, %v2663
    %v2827 = vsel %vm2795, %v2778, %v2665
    %v2828 = vsel %vm2795, %v2779, %v2667
    %v2829 = vsel %vm2795, %v2780, %v2669
    %v2830 = vsel %vm2795, %v2781, %v2671
    %v2831 = vsel %vm2795, %v2782, %v2673
    %v2832 = vsel %vm2795, %v2783, %v2675
    %v2833 = vsel %vm2795, %v2784, %v2677
    %v2834 = vsel %vm2795, %v2785, %v2679
    %v2835 = vsel %vm2795, %v2786, %v2681
    %v2836 = vsel %vm2795, %v2787, %v2683
    %v2837 = vsel %vm2795, %v2788, %v2685
    %v2838 = vsel %vm2795, %v2789, %v2687
    %v2839 = vsel %vm2795, %v2790, %v2689
    %v2840 = vsel %vm2795, %v2791, %v2691
    %v2841 = vsel %vm2795, %v2792, %v2693
    %v2842 = vsel %vm2795, %v2793, %v2695
    %v2843 = vsel %vm2795, %v2794, %v2697
    %vm2844 = vcmask 392192
    %2845 = vst.msk [vmem:[#allocation2] sm:$0xff] %vm2844, %v2796
    %2846 = vst.msk [vmem:[#allocation2 + $0x8] sm:$0xff] %vm2844, %v2797
    %2847 = vst.msk [vmem:[#allocation2 + $0x10] sm:$0xff] %vm2844, %v2798
    %2848 = vst.msk [vmem:[#allocation2 + $0x18] sm:$0xff] %vm2844, %v2799
    %2849 = vst.msk [vmem:[#allocation2 + $0x20] sm:$0xff] %vm2844, %v2800
    %2850 = vst.msk [vmem:[#allocation2 + $0x28] sm:$0xff] %vm2844, %v2801
    %2851 = vst.msk [vmem:[#allocation2 + $0x30] sm:$0xff] %vm2844, %v2802
    %2852 = vst.msk [vmem:[#allocation2 + $0x38] sm:$0xff] %vm2844, %v2803
    %2853 = vst.msk [vmem:[#allocation2 + $0x40] sm:$0xff] %vm2844, %v2804
    %2854 = vst.msk [vmem:[#allocation2 + $0x48] sm:$0xff] %vm2844, %v2805
    %2855 = vst.msk [vmem:[#allocation2 + $0x50] sm:$0xff] %vm2844, %v2806
    %2856 = vst.msk [vmem:[#allocation2 + $0x58] sm:$0xff] %vm2844, %v2807
    %2857 = vst.msk [vmem:[#allocation2 + $0x60] sm:$0xff] %vm2844, %v2808
    %2858 = vst.msk [vmem:[#allocation2 + $0x68] sm:$0xff] %vm2844, %v2809
    %2859 = vst.msk [vmem:[#allocation2 + $0x70] sm:$0xff] %vm2844, %v2810
    %2860 = vst.msk [vmem:[#allocation2 + $0x78] sm:$0xff] %vm2844, %v2811
    %2861 = vst.msk [vmem:[#allocation2 + $0x80] sm:$0xff] %vm2844, %v2812
    %2862 = vst.msk [vmem:[#allocation2 + $0x88] sm:$0xff] %vm2844, %v2813
    %2863 = vst.msk [vmem:[#allocation2 + $0x90] sm:$0xff] %vm2844, %v2814
    %2864 = vst.msk [vmem:[#allocation2 + $0x98] sm:$0xff] %vm2844, %v2815
    %2865 = vst.msk [vmem:[#allocation2 + $0xa0] sm:$0xff] %vm2844, %v2816
    %2866 = vst.msk [vmem:[#allocation2 + $0xa8] sm:$0xff] %vm2844, %v2817
    %2867 = vst.msk [vmem:[#allocation2 + $0xb0] sm:$0xff] %vm2844, %v2818
    %2868 = vst.msk [vmem:[#allocation2 + $0xb8] sm:$0xff] %vm2844, %v2819
    %2869 = vst.msk [vmem:[#allocation2 + $0xc0] sm:$0xff] %vm2844, %v2820
    %2870 = vst.msk [vmem:[#allocation2 + $0xc8] sm:$0xff] %vm2844, %v2821
    %2871 = vst.msk [vmem:[#allocation2 + $0xd0] sm:$0xff] %vm2844, %v2822
    %2872 = vst.msk [vmem:[#allocation2 + $0xd8] sm:$0xff] %vm2844, %v2823
    %2873 = vst.msk [vmem:[#allocation2 + $0xe0] sm:$0xff] %vm2844, %v2824
    %2874 = vst.msk [vmem:[#allocation2 + $0xe8] sm:$0xff] %vm2844, %v2825
    %2875 = vst.msk [vmem:[#allocation2 + $0xf0] sm:$0xff] %vm2844, %v2826
    %2876 = vst.msk [vmem:[#allocation2 + $0xf8] sm:$0xff] %vm2844, %v2827
    %2877 = vst.msk [vmem:[#allocation2 + $0x100] sm:$0xff] %vm2844, %v2828
    %2878 = vst.msk [vmem:[#allocation2 + $0x108] sm:$0xff] %vm2844, %v2829
    %2879 = vst.msk [vmem:[#allocation2 + $0x110] sm:$0xff] %vm2844, %v2830
    %2880 = vst.msk [vmem:[#allocation2 + $0x118] sm:$0xff] %vm2844, %v2831
    %2881 = vst.msk [vmem:[#allocation2 + $0x120] sm:$0xff] %vm2844, %v2832
    %2882 = vst.msk [vmem:[#allocation2 + $0x128] sm:$0xff] %vm2844, %v2833
    %2883 = vst.msk [vmem:[#allocation2 + $0x130] sm:$0xff] %vm2844, %v2834
    %2884 = vst.msk [vmem:[#allocation2 + $0x138] sm:$0xff] %vm2844, %v2835
    %2885 = vst.msk [vmem:[#allocation2 + $0x140] sm:$0xff] %vm2844, %v2836
    %2886 = vst.msk [vmem:[#allocation2 + $0x148] sm:$0xff] %vm2844, %v2837
    %2887 = vst.msk [vmem:[#allocation2 + $0x150] sm:$0xff] %vm2844, %v2838
    %2888 = vst.msk [vmem:[#allocation2 + $0x158] sm:$0xff] %vm2844, %v2839
    %2889 = vst.msk [vmem:[#allocation2 + $0x160] sm:$0xff] %vm2844, %v2840
    %2890 = vst.msk [vmem:[#allocation2 + $0x168] sm:$0xff] %vm2844, %v2841
    %2891 = vst.msk [vmem:[#allocation2 + $0x170] sm:$0xff] %vm2844, %v2842
    %2892 = vst.msk [vmem:[#allocation2 + $0x178] sm:$0xff] %vm2844, %v2843
    // Predicated region
    $region22: #{encoder_forward.1} parent=1 // pred_check
      _
    $region23: #{encoder_forward.1} parent=1 // pred_check_branch
      %2894 = sbr.rel (0) target = $region25
    $region24: #{encoder_forward.1} parent=1 // pred_region
      %s2896 = ssub.s32 6144, 6144
      %2897 = vsyncadd [#allocation3], %s2896
      %s2898 = sshll.u32 [#allocation2], 4
      %s2899 = int_to_ptr.vmem [resolvable:$true] %s2898
      %2904 = dma.vmem_to_hbm [thread:$0]  %s2899, 6144, %s5, [#allocation3], 128, 128, 8
    $region25: #{encoder_forward.1} parent=1 // pred_fallthru
      _
    // Predicated region
    $region26: #{encoder_forward.1} parent=1 // pred_check
      _
    $region27: #{encoder_forward.1} parent=1 // pred_check_branch
      %2906 = sbr.rel (0) target = $region29
    $region28: #{encoder_forward.1} parent=1 // pred_region
      %2907 = dma.done [#allocation3], 6144
    $region29: #{encoder_forward.1} parent=1 // pred_fallthru
      _
    %2908 = vsyncpa [#allocation3], 1

</llo_original>
